<compile_context>
chip_gen: v6e
topology: v6e:2x2x1
jax: 0.10.0
libtpu: 0.0.40
codegen_flags: <defaults>
</compile_context>

<pallas_src>
import functools

import jax
import jax.numpy as jnp
from jax.experimental import pallas as pl
from jax.experimental.pallas import tpu as pltpu

# ---------------------------------------------------------------------------
# Constants from the PyTorch module
# ---------------------------------------------------------------------------
IDENT_TENSORS = {
    'affine': [1, 0, 0, 0, 1, 0], 'rotation': [0], 'rotation_scale': [0, 1, 1],
    'rotation_scale_symmetric': [0, 1], 'rotation_translation': [0, 0, 0],
    'rotation_translation_scale': [0, 0, 0, 1, 1],
    'rotation_translation_scale_symmetric': [0, 0, 0, 1], 'scale': [1, 1],
    'scale_symmetric': [1], 'translation': [0, 0],
    'translation_scale': [0, 0, 1, 1], 'translation_scale_symmetric': [0, 0, 1],
}
N_PARAMS = {
    'affine': 6, 'rotation': 1, 'rotation_scale': 3, 'rotation_scale_symmetric': 2,
    'rotation_translation': 3, 'rotation_translation_scale': 5,
    'rotation_translation_scale_symmetric': 4, 'scale': 2, 'scale_symmetric': 1,
    'translation': 2, 'translation_scale': 4, 'translation_scale_symmetric': 3,
}

LEAKY_SLOPE = 0.01
BN_EPS = 1e-5


def _leaky(x):
    return jnp.where(x >= 0.0, x, LEAKY_SLOPE * x)


def _round_up(n, m):
    return ((n + m - 1) // m) * m


# ---------------------------------------------------------------------------
# Pallas kernel 1: fused conv-as-GEMM (transposed, lane-dense) + BN + leaky_relu
# ---------------------------------------------------------------------------
def _conv_bn_act_kernel(pt_ref, wt_ref, g_ref, b_ref, o_ref, *, m_true):
    # GEMM: acc[Cout, Mp] = W[Cout, Kp] @ patches[Kp, Mp]   (M on lanes -> dense stores)
    acc = jnp.dot(wt_ref[...], pt_ref[...], preferred_element_type=jnp.float32)
    # BatchNorm (training mode) statistics over M = B*Hout*Wout (lane-axis reduction).
    lane = jax.lax.broadcasted_iota(jnp.int32, acc.shape, 1)
    mask = (lane < m_true).astype(jnp.float32)
    inv_m = 1.0 / float(m_true)
    mean = jnp.sum(acc * mask, axis=1, keepdims=True) * inv_m        # [Cout, 1]
    diff = (acc - mean) * mask
    var = jnp.sum(diff * diff, axis=1, keepdims=True) * inv_m        # biased var (torch)
    scale = g_ref[...] * jax.lax.rsqrt(var + BN_EPS)                 # [Cout, 1]
    shift = b_ref[...] - mean * scale
    y = acc * scale + shift
    o_ref[...] = _leaky(y)


def _im2col_T(x_nhwc, kh, kw, padding):
    """Patches in transposed (K, M) layout, K = Cin*kh*kw (Cin outer, kh*kw inner)."""
    B, H, W, Cin = x_nhwc.shape
    xp = jnp.pad(x_nhwc, ((0, 0), (padding, padding), (padding, padding), (0, 0)))
    Hout = H + 2 * padding - kh + 1
    Wout = W + 2 * padding - kw + 1
    cols = []
    for i in range(kh):
        for j in range(kw):
            cols.append(xp[:, i:i + Hout, j:j + Wout, :])        # [B, Hout, Wout, Cin]
    arr = jnp.stack(cols, axis=0)                                 # [kh*kw, B, Hout, Wout, Cin]
    arr = jnp.transpose(arr, (4, 0, 1, 2, 3))                     # [Cin, kh*kw, B, Hout, Wout]
    K = Cin * kh * kw
    M = B * Hout * Wout
    return arr.reshape(K, M), Hout, Wout


def conv_bn_act(x_nhwc, w_oihw, gamma, beta, padding):
    """Conv2d (stride 1, no bias: cancelled by training-mode BN) + BN + leaky_relu.

    One pallas_call; the whole GEMM + stats + epilogue fits in VMEM at these sizes.
    # TODO(synk): add M-tiling with a two-pass stats reduction if used on large images.
    """
    B, H, W, Cin = x_nhwc.shape
    Cout, Cin2, kh, kw = w_oihw.shape
    assert Cin == Cin2
    pt, Hout, Wout = _im2col_T(x_nhwc.astype(jnp.float32), kh, kw, padding)  # [K, M]
    K, M = pt.shape
    Kp = _round_up(K, 8)            # sublane alignment of the contraction axis
    Mp = _round_up(M, 128)          # lane-dense output
    pt = jnp.pad(pt, ((0, Kp - K), (0, Mp - M)))
    wt = jnp.pad(w_oihw.reshape(Cout, K).astype(jnp.float32), ((0, 0), (0, Kp - K)))

    out_t = pl.pallas_call(
        functools.partial(_conv_bn_act_kernel, m_true=M),
        out_shape=jax.ShapeDtypeStruct((Cout, Mp), jnp.float32),
        grid=(1,),
        in_specs=[
            pl.BlockSpec((Kp, Mp), lambda i: (0, 0)),
            pl.BlockSpec((Cout, Kp), lambda i: (0, 0)),
            pl.BlockSpec((Cout, 1), lambda i: (0, 0)),
            pl.BlockSpec((Cout, 1), lambda i: (0, 0)),
        ],
        out_specs=pl.BlockSpec((Cout, Mp), lambda i: (0, 0)),
        compiler_params=pltpu.CompilerParams(dimension_semantics=("arbitrary",)),
    )(pt, wt,
      gamma.astype(jnp.float32).reshape(Cout, 1),
      beta.astype(jnp.float32).reshape(Cout, 1))

    out = out_t[:, :M].reshape(Cout, B, Hout, Wout)
    return jnp.transpose(out, (1, 2, 3, 0))                      # NHWC


# ---------------------------------------------------------------------------
# Pallas kernel 2: fused 3-layer LocHead, gridded over heads (weights VMEM-resident)
# ---------------------------------------------------------------------------
def _loc_head_kernel(feat_ref, w0_ref, b0_ref, w1_ref, b1_ref, w2_ref, b2_ref, o_ref):
    x = feat_ref[...]                                             # (B, feature_dim)
    h = _leaky(jnp.dot(x, w0_ref[...], preferred_element_type=jnp.float32) + b0_ref[...])
    h = _leaky(jnp.dot(h, w1_ref[...], preferred_element_type=jnp.float32) + b1_ref[...])
    o_ref[...] = jnp.dot(h, w2_ref[...], preferred_element_type=jnp.float32) + b2_ref[...]


def heads_forward_fused(feats, head_params, separate):
    """feats: [F, B, D] with F = num_heads (separate backbones) or 1 (shared).

    One pallas_call for all heads: grid axis = head index ("parallel" so v7x's two
    TensorCores can split the heads); intermediates never leave VMEM; no M padding.
    """
    num_heads = len(head_params)
    _, B, D = feats.shape
    H0 = head_params[0]['w0'].shape[1]
    H1 = head_params[0]['w1'].shape[1]
    P = head_params[0]['w2'].shape[1]

    w0 = jnp.stack([h['w0'] for h in head_params]).astype(jnp.float32)          # [nh, D, H0]
    b0 = jnp.stack([h['b0'] for h in head_params]).astype(jnp.float32)[:, None]  # [nh, 1, H0]
    w1 = jnp.stack([h['w1'] for h in head_params]).astype(jnp.float32)
    b1 = jnp.stack([h['b1'] for h in head_params]).astype(jnp.float32)[:, None]
    w2 = jnp.stack([h['w2'] for h in head_params]).astype(jnp.float32)
    b2 = jnp.stack([h['b2'] for h in head_params]).astype(jnp.float32)[:, None]

    feat_map = (lambda h: (h, 0, 0)) if separate else (lambda h: (0, 0, 0))

    out = pl.pallas_call(
        _loc_head_kernel,
        out_shape=jax.ShapeDtypeStruct((num_heads, B, P), jnp.float32),
        grid=(num_heads,),
        in_specs=[
            pl.BlockSpec((None, B, D), feat_map),
            pl.BlockSpec((None, D, H0), lambda h: (h, 0, 0)),
            pl.BlockSpec((None, 1, H0), lambda h: (h, 0, 0)),
            pl.BlockSpec((None, H0, H1), lambda h: (h, 0, 0)),
            pl.BlockSpec((None, 1, H1), lambda h: (h, 0, 0)),
            pl.BlockSpec((None, H1, P), lambda h: (h, 0, 0)),
            pl.BlockSpec((None, 1, P), lambda h: (h, 0, 0)),
        ],
        out_specs=pl.BlockSpec((None, B, P), lambda h: (h, 0, 0)),
        compiler_params=pltpu.CompilerParams(dimension_semantics=("parallel",)),
    )(feats.astype(jnp.float32), w0, b0, w1, b1, w2, b2)

    return [out[i] for i in range(num_heads)]


# ---------------------------------------------------------------------------
# Pooling (tiny, plain JAX / XLA)
# ---------------------------------------------------------------------------
def maxpool_2x2(x_nhwc):
    B, H, W, C = x_nhwc.shape
    H2, W2 = H // 2, W // 2
    x = x_nhwc[:, :H2 * 2, :W2 * 2, :]
    return x.reshape(B, H2, 2, W2, 2, C).max(axis=(2, 4))


def adaptive_avg_pool(x_nhwc, out_size=8):
    B, H, W, C = x_nhwc.shape
    rows = []
    for i in range(out_size):
        h0 = (i * H) // out_size
        h1 = ((i + 1) * H + out_size - 1) // out_size
        cols = []
        for j in range(out_size):
            w0 = (j * W) // out_size
            w1 = ((j + 1) * W + out_size - 1) // out_size
            cols.append(jnp.mean(x_nhwc[:, h0:h1, w0:w1, :], axis=(1, 2)))  # [B, C]
        rows.append(jnp.stack(cols, axis=1))                                # [B, out, C]
    return jnp.stack(rows, axis=1)                                          # [B, out, out, C]


# ---------------------------------------------------------------------------
# LocBackbone / LocNet
# ---------------------------------------------------------------------------
def loc_backbone_forward(x_nchw, bp):
    x = jnp.transpose(x_nchw, (0, 2, 3, 1))                         # NHWC
    x = conv_bn_act(x, bp['conv1_w'], bp['bn1_gamma'], bp['bn1_beta'], padding=2)
    x = maxpool_2x2(x)
    x = conv_bn_act(x, bp['conv2_w'], bp['bn2_gamma'], bp['bn2_beta'], padding=2)
    x = adaptive_avg_pool(x, 8)                                     # [B, 8, 8, C]
    # match torch.flatten(x, 1) on an NCHW tensor:
    x = jnp.transpose(x, (0, 3, 1, 2)).reshape(x.shape[0], -1)      # [B, C*64]
    return x


def loc_net_forward(x_nchw, params, separate_backbones):
    # invert_gradient (grad_reverse) is identity in the forward pass — nothing to do.
    if separate_backbones:
        feats = jnp.stack([loc_backbone_forward(x_nchw, bp) for bp in params['backbones']])
    else:
        feats = loc_backbone_forward(x_nchw, params['backbones'][0])[None]
    return heads_forward_fused(feats, params['heads'], separate_backbones)


# ---------------------------------------------------------------------------
# STN theta / grid / sampling
# ---------------------------------------------------------------------------
def get_stn_mode_theta(mode, theta, unbounded_stn):
    if mode == 'affine':
        t = theta if unbounded_stn else jnp.tanh(theta)
        return t.reshape(-1, 2, 3)
    B = theta.shape[0]
    a = jnp.ones((B,), jnp.float32); b = jnp.zeros((B,), jnp.float32)
    c = jnp.zeros((B,), jnp.float32); d = jnp.ones((B,), jnp.float32)
    tx = jnp.zeros((B,), jnp.float32); ty = jnp.zeros((B,), jnp.float32)
    if 'rotation' in mode:
        ang = theta[:, 0]
        a, b, c, d = jnp.cos(ang), -jnp.sin(ang), jnp.sin(ang), jnp.cos(ang)
    if 'translation' in mode:
        xi, yi = (0, 1) if mode.startswith('translation') else (1, 2)
        tx = theta[:, xi] if unbounded_stn else jnp.tanh(theta[:, xi])
        ty = theta[:, yi] if unbounded_stn else jnp.tanh(theta[:, yi])
    if 'scale' in mode:
        if 'symmetric' in mode:
            s = theta[:, -1] if unbounded_stn else jnp.tanh(theta[:, -1])
            sx, sy = s, s
        else:
            sx = theta[:, -2] if unbounded_stn else jnp.tanh(theta[:, -2])
            sy = theta[:, -1] if unbounded_stn else jnp.tanh(theta[:, -1])
        a, b, c, d = a * sx, b * sx, c * sy, d * sy
    row0 = jnp.stack([a, b, tx], axis=-1)
    row1 = jnp.stack([c, d, ty], axis=-1)
    return jnp.stack([row0, row1], axis=1)


def affine_grid(theta, h_out, w_out):
    """F.affine_grid(theta, [B, C, h_out, w_out], align_corners=True)."""
    xs = jnp.linspace(-1.0, 1.0, w_out)
    ys = jnp.linspace(-1.0, 1.0, h_out)
    yy, xx = jnp.meshgrid(ys, xs, indexing='ij')
    base = jnp.stack([xx, yy, jnp.ones_like(xx)], axis=-1)      # [H, W, 3]
    return jnp.einsum('hwk,bik->bhwi', base, theta)             # [B, H, W, 2] (x, y)


def grid_sample_matmul(x_nchw, grid):
    """F.grid_sample(x, grid, 'bilinear', padding_mode='zeros', align_corners=True)
    as a dense bilinear-weight matmul (MXU-friendly; no XLA gather)."""
    B, C, H, W = x_nchw.shape
    Ho, Wo = grid.shape[1], grid.shape[2]
    Q = Ho * Wo
    gx = grid[..., 0].reshape(B, Q)
    gy = grid[..., 1].reshape(B, Q)
    ix = (gx + 1.0) * 0.5 * (W - 1)
    iy = (gy + 1.0) * 0.5 * (H - 1)
    ix0 = jnp.floor(ix)
    iy0 = jnp.floor(iy)

    def axis_weights(i0, frac_hi, size):
        # Weighted one-hot matrices; out-of-range taps get weight 0 ('zeros' padding).
        idx = jnp.arange(size, dtype=jnp.int32)

        def tap(i_f, w):
            valid = (i_f >= 0) & (i_f <= size - 1)
            w = w * valid.astype(jnp.float32)
            i_c = jnp.clip(i_f, 0.0, float(size - 1)).astype(jnp.int32)
            one_hot = (idx[None, None, :] == i_c[..., None]).astype(jnp.float32)
            return one_hot * w[..., None]

        return tap(i0, 1.0 - frac_hi) + tap(i0 + 1.0, frac_hi)   # [B, Q, size]

    Ry = axis_weights(iy0, iy - iy0, H)                          # [B, Q, H]
    Rx = axis_weights(ix0, ix - ix0, W)                          # [B, Q, W]
    S = (Ry[..., :, None] * Rx[..., None, :]).reshape(B, Q, H * W)
    out = jnp.einsum('bcp,bqp->bcq', x_nchw.reshape(B, C, H * W).astype(jnp.float32), S)
    return out.reshape(B, C, Ho, Wo)


# ---------------------------------------------------------------------------
# STN / AugmentationNetwork forward
# ---------------------------------------------------------------------------
def stn_forward(x_nchw, params, cfg):
    theta_params = loc_net_forward(x_nchw, params, cfg['separate_localization_net'])
    thetas = [get_stn_mode_theta(cfg['mode'], p, cfg['unbounded_stn'])
              for p in theta_params]
    if cfg['theta_norm']:
        thetas = [t / jnp.clip(jnp.sum(jnp.abs(t), axis=2, keepdims=True), 1.0, None)
                  for t in thetas]
    resolutions = ([[cfg['global_res'], cfg['global_res']]] * cfg['global_crops_number']
                   + [[cfg['local_res'], cfg['local_res']]] * cfg['local_crops_number'])
    crops = []
    for theta, res in zip(thetas, resolutions):
        grid = affine_grid(theta, res[0], res[1])
        crops.append(grid_sample_matmul(x_nchw, grid))
    return crops, thetas


def augmentation_network_forward(x_nchw, params, cfg):
    # AugmentationNetwork.forward with a Tensor input simply delegates to the STN.
    # TODO(synk): the list-of-PIL-images branch (torchvision resize + per-image cat)
    # is host-side preprocessing with no kernel content; only the Tensor path is built.
    return stn_forward(x_nchw, params, cfg)


# ---------------------------------------------------------------------------
# Deterministic parameter init (synthetic; mirrors the __init__ shapes)
# NOTE: conv biases are omitted — training-mode BatchNorm subtracts the batch mean,
# so a per-channel conv bias cancels exactly and does not affect the forward output.
# ---------------------------------------------------------------------------
def init_params(key, cfg):
    mode = cfg['mode']
    n_params = N_PARAMS[mode]
    conv1_d, conv2_d = cfg['conv1_depth'], cfg['conv2_depth']
    feature_dim = conv2_d * 8 * 8
    num_heads = cfg['global_crops_number'] + cfg['local_crops_number']
    num_backbones = num_heads if cfg['separate_localization_net'] else 1

    keys = iter(jax.random.split(key, 4 * num_backbones + 4 * num_heads + 4))
    nrm = lambda k, shape, s=0.1: s * jax.random.normal(k, shape, dtype=jnp.float32)

    backbones = []
    for _ in range(num_backbones):
        backbones.append({
            'conv1_w': nrm(next(keys), (conv1_d, 3, 3, 3)),
            'bn1_gamma': jnp.ones((conv1_d,), jnp.float32),
            'bn1_beta': jnp.zeros((conv1_d,), jnp.float32),
            'conv2_w': nrm(next(keys), (conv2_d, conv1_d, 3, 3)),
            'bn2_gamma': jnp.ones((conv2_d,), jnp.float32),
            'bn2_beta': jnp.zeros((conv2_d,), jnp.float32),
        })

    heads = []
    for _ in range(num_heads):
        heads.append({
            # stored as [in, out] (transposed vs. nn.Linear's [out, in])
            'w0': nrm(next(keys), (feature_dim, 128), 0.05),
            'b0': jnp.zeros((128,), jnp.float32),
            'w1': nrm(next(keys), (128, 64), 0.05),
            'b1': jnp.zeros((64,), jnp.float32),
            'w2': jnp.zeros((64, n_params), jnp.float32),               # zeroed in __init__
            'b2': jnp.array(IDENT_TENSORS[mode], dtype=jnp.float32),    # identity bias
        })

    return {'backbones': backbones, 'heads': heads}


# ---------------------------------------------------------------------------
# Main
# ---------------------------------------------------------------------------
if __name__ == "__main__":
    cfg = dict(
        mode='affine',
        unbounded_stn=False,
        theta_norm=False,
        separate_localization_net=False,
        global_crops_number=2,
        local_crops_number=2,
        global_res=16,
        local_res=8,
        conv1_depth=8,
        conv2_depth=8,
    )

    key = jax.random.PRNGKey(0)
    k_x, k_p = jax.random.split(key)
    x = jax.random.normal(k_x, (2, 3, 16, 16), dtype=jnp.float32)   # NCHW like PyTorch
    params = init_params(k_p, cfg)

    fwd = jax.jit(functools.partial(augmentation_network_forward, cfg=cfg))
    crops, thetas = fwd(x, params)
    jax.block_until_ready((crops, thetas))

    # light sanity checks on shapes
    assert len(crops) == 4 and len(thetas) == 4
    assert crops[0].shape == (2, 3, 16, 16) and crops[2].shape == (2, 3, 8, 8)
    assert thetas[0].shape == (2, 2, 3)

    print("KERNEL_OK")
</pallas_src>

<mosaic_0001>
module attributes {stable_mosaic.version = 11 : i64} {
  func.func @_conv_bn_act_kernel(%arg0: i32, %arg1: memref<32x768xf32, #tpu.memory_space<vmem>>, %arg2: memref<8x32xf32, #tpu.memory_space<vmem>>, %arg3: memref<8x1xf32, #tpu.memory_space<vmem>>, %arg4: memref<8x1xf32, #tpu.memory_space<vmem>>, %arg5: memref<8x768xf32, #tpu.memory_space<vmem>>) attributes {dimension_semantics = [#tpu.dimension_semantics<arbitrary>], iteration_bounds = array<i64: 1>, scalar_prefetch = 0 : i64, scratch_operands = 0 : i64, tpu.core_type = #tpu.core_type<tc>, window_params = [{pipeline_mode = #tpu.pipeline_mode<synchronous>, transform_indices = @transform_0, window_bounds = array<i64: 32, 768>}, {pipeline_mode = #tpu.pipeline_mode<synchronous>, transform_indices = @transform_1, window_bounds = array<i64: 8, 32>}, {pipeline_mode = #tpu.pipeline_mode<synchronous>, transform_indices = @transform_2, window_bounds = array<i64: 8, 1>}, {pipeline_mode = #tpu.pipeline_mode<synchronous>, transform_indices = @transform_3, window_bounds = array<i64: 8, 1>}, {pipeline_mode = #tpu.pipeline_mode<synchronous>, transform_indices = @transform_4, window_bounds = array<i64: 8, 768>}]} {
    %c0 = arith.constant 0 : index
    %c0_0 = arith.constant 0 : index
    %0 = vector.load %arg2[%c0, %c0_0] : memref<8x32xf32, #tpu.memory_space<vmem>>, vector<8x32xf32>
    %c0_1 = arith.constant 0 : index
    %c0_2 = arith.constant 0 : index
    %1 = vector.load %arg1[%c0_1, %c0_2] : memref<32x768xf32, #tpu.memory_space<vmem>>, vector<32x768xf32>
    %cst = arith.constant dense<0.000000e+00> : vector<8x768xf32>
    %2 = tpu.matmul %0, %1, %cst {dimension_numbers = #tpu.dot_dimension_numbers<[1], [0], [0], [1], [0, 0, 1, 1], [], []>} : vector<8x32xf32>, vector<32x768xf32>, vector<8x768xf32> -> vector<8x768xf32>
    %3 = tpu.iota {dimensions = array<i32: 1>} : vector<8x768xi32>
    %c648_i32 = arith.constant 648 : i32
    %4 = vector.broadcast %c648_i32 : i32 to vector<8x768xi32>
    %5 = arith.cmpi slt, %3, %4 : vector<8x768xi32>
    %6 = arith.extui %5 : vector<8x768xi1> to vector<8x768xi32>
    %7 = arith.sitofp %6 : vector<8x768xi32> to vector<8x768xf32>
    %8 = arith.mulf %2, %7 : vector<8x768xf32>
    %cst_3 = arith.constant dense<0.000000e+00> : vector<8xf32>
    %9 = vector.multi_reduction <add>, %8, %cst_3 [1] : vector<8x768xf32> to vector<8xf32>
    %10 = vector.shape_cast %9 : vector<8xf32> to vector<8x1xf32>
    %cst_4 = arith.constant 0.00154320989 : f32
    %11 = vector.broadcast %cst_4 : f32 to vector<8x1xf32>
    %12 = arith.mulf %10, %11 : vector<8x1xf32>
    %13 = vector.broadcast %12 : vector<8x1xf32> to vector<8x768xf32>
    %14 = arith.subf %2, %13 : vector<8x768xf32>
    %15 = arith.mulf %14, %7 : vector<8x768xf32>
    %16 = arith.mulf %15, %15 : vector<8x768xf32>
    %cst_5 = arith.constant dense<0.000000e+00> : vector<8xf32>
    %17 = vector.multi_reduction <add>, %16, %cst_5 [1] : vector<8x768xf32> to vector<8xf32>
    %18 = vector.shape_cast %17 : vector<8xf32> to vector<8x1xf32>
    %cst_6 = arith.constant 0.00154320989 : f32
    %19 = vector.broadcast %cst_6 : f32 to vector<8x1xf32>
    %20 = arith.mulf %18, %19 : vector<8x1xf32>
    %c0_7 = arith.constant 0 : index
    %c0_8 = arith.constant 0 : index
    %21 = vector.load %arg3[%c0_7, %c0_8] : memref<8x1xf32, #tpu.memory_space<vmem>>, vector<8x1xf32>
    %cst_9 = arith.constant 9.99999974E-6 : f32
    %22 = vector.broadcast %cst_9 : f32 to vector<8x1xf32>
    %23 = arith.addf %20, %22 : vector<8x1xf32>
    %24 = math.rsqrt %23 : vector<8x1xf32>
    %25 = arith.mulf %21, %24 : vector<8x1xf32>
    %c0_10 = arith.constant 0 : index
    %c0_11 = arith.constant 0 : index
    %26 = vector.load %arg4[%c0_10, %c0_11] : memref<8x1xf32, #tpu.memory_space<vmem>>, vector<8x1xf32>
    %27 = arith.mulf %12, %25 : vector<8x1xf32>
    %28 = arith.subf %26, %27 : vector<8x1xf32>
    %29 = vector.broadcast %25 : vector<8x1xf32> to vector<8x768xf32>
    %30 = arith.mulf %2, %29 : vector<8x768xf32>
    %31 = vector.broadcast %28 : vector<8x1xf32> to vector<8x768xf32>
    %32 = arith.addf %30, %31 : vector<8x768xf32>
    %cst_12 = arith.constant 0.000000e+00 : f32
    %33 = vector.broadcast %cst_12 : f32 to vector<8x768xf32>
    %34 = arith.cmpf oge, %32, %33 : vector<8x768xf32>
    %cst_13 = arith.constant 0.00999999977 : f32
    %35 = vector.broadcast %cst_13 : f32 to vector<8x768xf32>
    %36 = arith.mulf %35, %32 : vector<8x768xf32>
    %37 = arith.select %34, %32, %36 : vector<8x768xi1>, vector<8x768xf32>
    %c0_14 = arith.constant 0 : index
    %c0_15 = arith.constant 0 : index
    %38 = vector.load %arg5[%c0_14, %c0_15] : memref<8x768xf32, #tpu.memory_space<vmem>>, vector<8x768xf32>
    tpu.vector_store %arg5[%c0_14, %c0_15], %37 {strides = array<i32>} : memref<8x768xf32, #tpu.memory_space<vmem>>, vector<8x768xf32>,
    return
  }
  func.func @transform_0(%arg0: i32) -> (i32, i32) {
    %c0_i32 = arith.constant 0 : i32
    %c0_i32_0 = arith.constant 0 : i32
    %c0_i32_1 = arith.constant 0 : i32
    return %c0_i32, %c0_i32_0 : i32, i32
  }
  func.func @transform_1(%arg0: i32) -> (i32, i32) {
    %c0_i32 = arith.constant 0 : i32
    %c0_i32_0 = arith.constant 0 : i32
    %c0_i32_1 = arith.constant 0 : i32
    return %c0_i32, %c0_i32_0 : i32, i32
  }
  func.func @transform_2(%arg0: i32) -> (i32, i32) {
    %c0_i32 = arith.constant 0 : i32
    %c0_i32_0 = arith.constant 0 : i32
    %c0_i32_1 = arith.constant 0 : i32
    return %c0_i32, %c0_i32_0 : i32, i32
  }
  func.func @transform_3(%arg0: i32) -> (i32, i32) {
    %c0_i32 = arith.constant 0 : i32
    %c0_i32_0 = arith.constant 0 : i32
    %c0_i32_1 = arith.constant 0 : i32
    return %c0_i32, %c0_i32_0 : i32, i32
  }
  func.func @transform_4(%arg0: i32) -> (i32, i32) {
    %c0_i32 = arith.constant 0 : i32
    %c0_i32_0 = arith.constant 0 : i32
    %c0_i32_1 = arith.constant 0 : i32
    return %c0_i32, %c0_i32_0 : i32, i32
  }
}

module attributes {stable_mosaic.version = 11 : i64} {
  func.func @_conv_bn_act_kernel(%arg0: i32, %arg1: memref<72x256xf32, #tpu.memory_space<vmem>>, %arg2: memref<8x72xf32, #tpu.memory_space<vmem>>, %arg3: memref<8x1xf32, #tpu.memory_space<vmem>>, %arg4: memref<8x1xf32, #tpu.memory_space<vmem>>, %arg5: memref<8x256xf32, #tpu.memory_space<vmem>>) attributes {dimension_semantics = [#tpu.dimension_semantics<arbitrary>], iteration_bounds = array<i64: 1>, scalar_prefetch = 0 : i64, scratch_operands = 0 : i64, tpu.core_type = #tpu.core_type<tc>, window_params = [{pipeline_mode = #tpu.pipeline_mode<synchronous>, transform_indices = @transform_0, window_bounds = array<i64: 72, 256>}, {pipeline_mode = #tpu.pipeline_mode<synchronous>, transform_indices = @transform_1, window_bounds = array<i64: 8, 72>}, {pipeline_mode = #tpu.pipeline_mode<synchronous>, transform_indices = @transform_2, window_bounds = array<i64: 8, 1>}, {pipeline_mode = #tpu.pipeline_mode<synchronous>, transform_indices = @transform_3, window_bounds = array<i64: 8, 1>}, {pipeline_mode = #tpu.pipeline_mode<synchronous>, transform_indices = @transform_4, window_bounds = array<i64: 8, 256>}]} {
    %c0 = arith.constant 0 : index
    %c0_0 = arith.constant 0 : index
    %0 = vector.load %arg2[%c0, %c0_0] : memref<8x72xf32, #tpu.memory_space<vmem>>, vector<8x72xf32>
    %c0_1 = arith.constant 0 : index
    %c0_2 = arith.constant 0 : index
    %1 = vector.load %arg1[%c0_1, %c0_2] : memref<72x256xf32, #tpu.memory_space<vmem>>, vector<72x256xf32>
    %cst = arith.constant dense<0.000000e+00> : vector<8x256xf32>
    %2 = tpu.matmul %0, %1, %cst {dimension_numbers = #tpu.dot_dimension_numbers<[1], [0], [0], [1], [0, 0, 1, 1], [], []>} : vector<8x72xf32>, vector<72x256xf32>, vector<8x256xf32> -> vector<8x256xf32>
    %3 = tpu.iota {dimensions = array<i32: 1>} : vector<8x256xi32>
    %c242_i32 = arith.constant 242 : i32
    %4 = vector.broadcast %c242_i32 : i32 to vector<8x256xi32>
    %5 = arith.cmpi slt, %3, %4 : vector<8x256xi32>
    %6 = arith.extui %5 : vector<8x256xi1> to vector<8x256xi32>
    %7 = arith.sitofp %6 : vector<8x256xi32> to vector<8x256xf32>
    %8 = arith.mulf %2, %7 : vector<8x256xf32>
    %cst_3 = arith.constant dense<0.000000e+00> : vector<8xf32>
    %9 = vector.multi_reduction <add>, %8, %cst_3 [1] : vector<8x256xf32> to vector<8xf32>
    %10 = vector.shape_cast %9 : vector<8xf32> to vector<8x1xf32>
    %cst_4 = arith.constant 0.00413223123 : f32
    %11 = vector.broadcast %cst_4 : f32 to vector<8x1xf32>
    %12 = arith.mulf %10, %11 : vector<8x1xf32>
    %13 = vector.broadcast %12 : vector<8x1xf32> to vector<8x256xf32>
    %14 = arith.subf %2, %13 : vector<8x256xf32>
    %15 = arith.mulf %14, %7 : vector<8x256xf32>
    %16 = arith.mulf %15, %15 : vector<8x256xf32>
    %cst_5 = arith.constant dense<0.000000e+00> : vector<8xf32>
    %17 = vector.multi_reduction <add>, %16, %cst_5 [1] : vector<8x256xf32> to vector<8xf32>
    %18 = vector.shape_cast %17 : vector<8xf32> to vector<8x1xf32>
    %cst_6 = arith.constant 0.00413223123 : f32
    %19 = vector.broadcast %cst_6 : f32 to vector<8x1xf32>
    %20 = arith.mulf %18, %19 : vector<8x1xf32>
    %c0_7 = arith.constant 0 : index
    %c0_8 = arith.constant 0 : index
    %21 = vector.load %arg3[%c0_7, %c0_8] : memref<8x1xf32, #tpu.memory_space<vmem>>, vector<8x1xf32>
    %cst_9 = arith.constant 9.99999974E-6 : f32
    %22 = vector.broadcast %cst_9 : f32 to vector<8x1xf32>
    %23 = arith.addf %20, %22 : vector<8x1xf32>
    %24 = math.rsqrt %23 : vector<8x1xf32>
    %25 = arith.mulf %21, %24 : vector<8x1xf32>
    %c0_10 = arith.constant 0 : index
    %c0_11 = arith.constant 0 : index
    %26 = vector.load %arg4[%c0_10, %c0_11] : memref<8x1xf32, #tpu.memory_space<vmem>>, vector<8x1xf32>
    %27 = arith.mulf %12, %25 : vector<8x1xf32>
    %28 = arith.subf %26, %27 : vector<8x1xf32>
    %29 = vector.broadcast %25 : vector<8x1xf32> to vector<8x256xf32>
    %30 = arith.mulf %2, %29 : vector<8x256xf32>
    %31 = vector.broadcast %28 : vector<8x1xf32> to vector<8x256xf32>
    %32 = arith.addf %30, %31 : vector<8x256xf32>
    %cst_12 = arith.constant 0.000000e+00 : f32
    %33 = vector.broadcast %cst_12 : f32 to vector<8x256xf32>
    %34 = arith.cmpf oge, %32, %33 : vector<8x256xf32>
    %cst_13 = arith.constant 0.00999999977 : f32
    %35 = vector.broadcast %cst_13 : f32 to vector<8x256xf32>
    %36 = arith.mulf %35, %32 : vector<8x256xf32>
    %37 = arith.select %34, %32, %36 : vector<8x256xi1>, vector<8x256xf32>
    %c0_14 = arith.constant 0 : index
    %c0_15 = arith.constant 0 : index
    %38 = vector.load %arg5[%c0_14, %c0_15] : memref<8x256xf32, #tpu.memory_space<vmem>>, vector<8x256xf32>
    tpu.vector_store %arg5[%c0_14, %c0_15], %37 {strides = array<i32>} : memref<8x256xf32, #tpu.memory_space<vmem>>, vector<8x256xf32>,
    return
  }
  func.func @transform_0(%arg0: i32) -> (i32, i32) {
    %c0_i32 = arith.constant 0 : i32
    %c0_i32_0 = arith.constant 0 : i32
    %c0_i32_1 = arith.constant 0 : i32
    return %c0_i32, %c0_i32_0 : i32, i32
  }
  func.func @transform_1(%arg0: i32) -> (i32, i32) {
    %c0_i32 = arith.constant 0 : i32
    %c0_i32_0 = arith.constant 0 : i32
    %c0_i32_1 = arith.constant 0 : i32
    return %c0_i32, %c0_i32_0 : i32, i32
  }
  func.func @transform_2(%arg0: i32) -> (i32, i32) {
    %c0_i32 = arith.constant 0 : i32
    %c0_i32_0 = arith.constant 0 : i32
    %c0_i32_1 = arith.constant 0 : i32
    return %c0_i32, %c0_i32_0 : i32, i32
  }
  func.func @transform_3(%arg0: i32) -> (i32, i32) {
    %c0_i32 = arith.constant 0 : i32
    %c0_i32_0 = arith.constant 0 : i32
    %c0_i32_1 = arith.constant 0 : i32
    return %c0_i32, %c0_i32_0 : i32, i32
  }
  func.func @transform_4(%arg0: i32) -> (i32, i32) {
    %c0_i32 = arith.constant 0 : i32
    %c0_i32_0 = arith.constant 0 : i32
    %c0_i32_1 = arith.constant 0 : i32
    return %c0_i32, %c0_i32_0 : i32, i32
  }
}

module attributes {stable_mosaic.version = 11 : i64} {
  func.func @_loc_head_kernel(%arg0: i32, %arg1: memref<1x2x512xf32, #tpu.memory_space<vmem>>, %arg2: memref<1x512x128xf32, #tpu.memory_space<vmem>>, %arg3: memref<1x1x128xf32, #tpu.memory_space<vmem>>, %arg4: memref<1x128x64xf32, #tpu.memory_space<vmem>>, %arg5: memref<1x1x64xf32, #tpu.memory_space<vmem>>, %arg6: memref<1x64x6xf32, #tpu.memory_space<vmem>>, %arg7: memref<1x1x6xf32, #tpu.memory_space<vmem>>, %arg8: memref<1x2x6xf32, #tpu.memory_space<vmem>>) attributes {dimension_semantics = [#tpu.dimension_semantics<parallel>], iteration_bounds = array<i64: 4>, scalar_prefetch = 0 : i64, scratch_operands = 0 : i64, tpu.core_type = #tpu.core_type<tc>, window_params = [{pipeline_mode = #tpu.pipeline_mode<synchronous>, transform_indices = @transform_0, window_bounds = array<i64: 1, 2, 512>}, {transform_indices = @transform_1, window_bounds = array<i64: 1, 512, 128>}, {transform_indices = @transform_2, window_bounds = array<i64: 1, 1, 128>}, {transform_indices = @transform_3, window_bounds = array<i64: 1, 128, 64>}, {transform_indices = @transform_4, window_bounds = array<i64: 1, 1, 64>}, {transform_indices = @transform_5, window_bounds = array<i64: 1, 64, 6>}, {transform_indices = @transform_6, window_bounds = array<i64: 1, 1, 6>}, {transform_indices = @transform_7, window_bounds = array<i64: 1, 2, 6>}]} {
    %c0 = arith.constant 0 : index
    %c0_0 = arith.constant 0 : index
    %c0_1 = arith.constant 0 : index
    %0 = vector.load %arg1[%c0, %c0_0, %c0_1] : memref<1x2x512xf32, #tpu.memory_space<vmem>>, vector<1x2x512xf32>
    %1 = vector.shape_cast %0 : vector<1x2x512xf32> to vector<2x512xf32>
    %c0_2 = arith.constant 0 : index
    %c0_3 = arith.constant 0 : index
    %c0_4 = arith.constant 0 : index
    %2 = vector.load %arg2[%c0_2, %c0_3, %c0_4] : memref<1x512x128xf32, #tpu.memory_space<vmem>>, vector<1x512x128xf32>
    %3 = vector.shape_cast %2 : vector<1x512x128xf32> to vector<512x128xf32>
    %cst = arith.constant dense<0.000000e+00> : vector<2x128xf32>
    %4 = tpu.matmul %1, %3, %cst {dimension_numbers = #tpu.dot_dimension_numbers<[1], [0], [0], [1], [0, 0, 1, 1], [], []>} : vector<2x512xf32>, vector<512x128xf32>, vector<2x128xf32> -> vector<2x128xf32>
    %c0_5 = arith.constant 0 : index
    %c0_6 = arith.constant 0 : index
    %c0_7 = arith.constant 0 : index
    %5 = vector.load %arg3[%c0_5, %c0_6, %c0_7] : memref<1x1x128xf32, #tpu.memory_space<vmem>>, vector<1x1x128xf32>
    %6 = vector.shape_cast %5 : vector<1x1x128xf32> to vector<1x128xf32>
    %7 = vector.broadcast %6 : vector<1x128xf32> to vector<2x128xf32>
    %8 = arith.addf %4, %7 : vector<2x128xf32>
    %cst_8 = arith.constant 0.000000e+00 : f32
    %9 = vector.broadcast %cst_8 : f32 to vector<2x128xf32>
    %10 = arith.cmpf oge, %8, %9 : vector<2x128xf32>
    %cst_9 = arith.constant 0.00999999977 : f32
    %11 = vector.broadcast %cst_9 : f32 to vector<2x128xf32>
    %12 = arith.mulf %11, %8 : vector<2x128xf32>
    %13 = arith.select %10, %8, %12 : vector<2x128xi1>, vector<2x128xf32>
    %c0_10 = arith.constant 0 : index
    %c0_11 = arith.constant 0 : index
    %c0_12 = arith.constant 0 : index
    %14 = vector.load %arg4[%c0_10, %c0_11, %c0_12] : memref<1x128x64xf32, #tpu.memory_space<vmem>>, vector<1x128x64xf32>
    %15 = vector.shape_cast %14 : vector<1x128x64xf32> to vector<128x64xf32>
    %cst_13 = arith.constant dense<0.000000e+00> : vector<2x64xf32>
    %16 = tpu.matmul %13, %15, %cst_13 {dimension_numbers = #tpu.dot_dimension_numbers<[1], [0], [0], [1], [0, 0, 1, 1], [], []>} : vector<2x128xf32>, vector<128x64xf32>, vector<2x64xf32> -> vector<2x64xf32>
    %c0_14 = arith.constant 0 : index
    %c0_15 = arith.constant 0 : index
    %c0_16 = arith.constant 0 : index
    %17 = vector.load %arg5[%c0_14, %c0_15, %c0_16] : memref<1x1x64xf32, #tpu.memory_space<vmem>>, vector<1x1x64xf32>
    %18 = vector.shape_cast %17 : vector<1x1x64xf32> to vector<1x64xf32>
    %19 = vector.broadcast %18 : vector<1x64xf32> to vector<2x64xf32>
    %20 = arith.addf %16, %19 : vector<2x64xf32>
    %cst_17 = arith.constant 0.000000e+00 : f32
    %21 = vector.broadcast %cst_17 : f32 to vector<2x64xf32>
    %22 = arith.cmpf oge, %20, %21 : vector<2x64xf32>
    %cst_18 = arith.constant 0.00999999977 : f32
    %23 = vector.broadcast %cst_18 : f32 to vector<2x64xf32>
    %24 = arith.mulf %23, %20 : vector<2x64xf32>
    %25 = arith.select %22, %20, %24 : vector<2x64xi1>, vector<2x64xf32>
    %c0_19 = arith.constant 0 : index
    %c0_20 = arith.constant 0 : index
    %c0_21 = arith.constant 0 : index
    %26 = vector.load %arg6[%c0_19, %c0_20, %c0_21] : memref<1x64x6xf32, #tpu.memory_space<vmem>>, vector<1x64x6xf32>
    %27 = vector.shape_cast %26 : vector<1x64x6xf32> to vector<64x6xf32>
    %cst_22 = arith.constant dense<0.000000e+00> : vector<2x6xf32>
    %28 = tpu.matmul %25, %27, %cst_22 {dimension_numbers = #tpu.dot_dimension_numbers<[1], [0], [0], [1], [0, 0, 1, 1], [], []>} : vector<2x64xf32>, vector<64x6xf32>, vector<2x6xf32> -> vector<2x6xf32>
    %c0_23 = arith.constant 0 : index
    %c0_24 = arith.constant 0 : index
    %c0_25 = arith.constant 0 : index
    %29 = vector.load %arg7[%c0_23, %c0_24, %c0_25] : memref<1x1x6xf32, #tpu.memory_space<vmem>>, vector<1x1x6xf32>
    %30 = vector.shape_cast %29 : vector<1x1x6xf32> to vector<1x6xf32>
    %31 = vector.broadcast %30 : vector<1x6xf32> to vector<2x6xf32>
    %32 = arith.addf %28, %31 : vector<2x6xf32>
    %c0_26 = arith.constant 0 : index
    %c0_27 = arith.constant 0 : index
    %c0_28 = arith.constant 0 : index
    %33 = vector.load %arg8[%c0_26, %c0_27, %c0_28] : memref<1x2x6xf32, #tpu.memory_space<vmem>>, vector<1x2x6xf32>
    %34 = vector.shape_cast %33 : vector<1x2x6xf32> to vector<2x6xf32>
    %35 = vector.shape_cast %32 : vector<2x6xf32> to vector<1x2x6xf32>
    tpu.vector_store %arg8[%c0_26, %c0_27, %c0_28], %35 {strides = array<i32>} : memref<1x2x6xf32, #tpu.memory_space<vmem>>, vector<1x2x6xf32>,
    return
  }
  func.func @transform_0(%arg0: i32) -> (i32, i32, i32) {
    %c0_i32 = arith.constant 0 : i32
    %c0_i32_0 = arith.constant 0 : i32
    %c0_i32_1 = arith.constant 0 : i32
    %c0_i32_2 = arith.constant 0 : i32
    return %c0_i32, %c0_i32_0, %c0_i32_1 : i32, i32, i32
  }
  func.func @transform_1(%arg0: i32) -> (i32, i32, i32) {
    %c0_i32 = arith.constant 0 : i32
    %c0_i32_0 = arith.constant 0 : i32
    %c0_i32_1 = arith.constant 0 : i32
    return %arg0, %c0_i32, %c0_i32_0 : i32, i32, i32
  }
  func.func @transform_2(%arg0: i32) -> (i32, i32, i32) {
    %c0_i32 = arith.constant 0 : i32
    %c0_i32_0 = arith.constant 0 : i32
    %c0_i32_1 = arith.constant 0 : i32
    return %arg0, %c0_i32, %c0_i32_0 : i32, i32, i32
  }
  func.func @transform_3(%arg0: i32) -> (i32, i32, i32) {
    %c0_i32 = arith.constant 0 : i32
    %c0_i32_0 = arith.constant 0 : i32
    %c0_i32_1 = arith.constant 0 : i32
    return %arg0, %c0_i32, %c0_i32_0 : i32, i32, i32
  }
  func.func @transform_4(%arg0: i32) -> (i32, i32, i32) {
    %c0_i32 = arith.constant 0 : i32
    %c0_i32_0 = arith.constant 0 : i32
    %c0_i32_1 = arith.constant 0 : i32
    return %arg0, %c0_i32, %c0_i32_0 : i32, i32, i32
  }
  func.func @transform_5(%arg0: i32) -> (i32, i32, i32) {
    %c0_i32 = arith.constant 0 : i32
    %c0_i32_0 = arith.constant 0 : i32
    %c0_i32_1 = arith.constant 0 : i32
    return %arg0, %c0_i32, %c0_i32_0 : i32, i32, i32
  }
  func.func @transform_6(%arg0: i32) -> (i32, i32, i32) {
    %c0_i32 = arith.constant 0 : i32
    %c0_i32_0 = arith.constant 0 : i32
    %c0_i32_1 = arith.constant 0 : i32
    return %arg0, %c0_i32, %c0_i32_0 : i32, i32, i32
  }
  func.func @transform_7(%arg0: i32) -> (i32, i32, i32) {
    %c0_i32 = arith.constant 0 : i32
    %c0_i32_0 = arith.constant 0 : i32
    %c0_i32_1 = arith.constant 0 : i32
    return %arg0, %c0_i32, %c0_i32_0 : i32, i32, i32
  }
}

</mosaic_0001>

<llo_original>
// kernel: augmentation_network_forward.3
$region0: #{augmentation_network_forward.3}
  #allocation0 [shape = 'u32[]', space=smem, size = 0x4, offset = 0x4, fixed_abs, tag = 'smem constant byte address 0x4 - core index']
  #allocation1 [shape = 'u32[144,128]{1,0:T(1,128)}', space=vmem, size = 0x12000, scoped, tag = 'internal scratch']
  %s0 = inlined_call_operand.vmem [shape: f32[32,768], index: 0, kind: input, shape index: {}]
  %s1 = inlined_call_operand.vmem [shape: f32[8,32], index: 1, kind: input, shape index: {}]
  %s2 = inlined_call_operand.vmem [shape: f32[8,1], index: 2, kind: input, shape index: {}]
  %s3 = inlined_call_operand.vmem [shape: f32[8,1], index: 3, kind: input, shape index: {}]
  %s4 = inlined_call_operand.vmem [shape: f32[8,768], index: 4, kind: output, shape index: {}]
  %s5 = sld [smem:[#allocation0]]
  $region26: #{augmentation_network_forward.3} parent=0
    _
  %s7 = ssub.s32 1, %s5
  %s8 = scalar_select 0, %s7, %s5
  // Predicated region
  $region2: #{augmentation_network_forward.3} parent=0 // pred_check
    _
  $region3: #{augmentation_network_forward.3} parent=0 // pred_check_branch
    %10 = sbr.rel (0) target = $region5
  $region4: #{augmentation_network_forward.3} parent=0 // pred_region
    _
  $region5: #{augmentation_network_forward.3} parent=0 // pred_fallthru
    _
  // Predicated region
  $region6: #{augmentation_network_forward.3} parent=0 // pred_check
    _
  $region7: #{augmentation_network_forward.3} parent=0 // pred_check_branch
    %12 = sbr.rel (0) target = $region9
  $region8: #{augmentation_network_forward.3} parent=0 // pred_region
    _
  $region9: #{augmentation_network_forward.3} parent=0 // pred_fallthru
    _
  // Predicated region
  $region10: #{augmentation_network_forward.3} parent=0 // pred_check
    _
  $region11: #{augmentation_network_forward.3} parent=0 // pred_check_branch
    %14 = sbr.rel (0) target = $region13
  $region12: #{augmentation_network_forward.3} parent=0 // pred_region
    _
  $region13: #{augmentation_network_forward.3} parent=0 // pred_fallthru
    _
  // Predicated region
  $region14: #{augmentation_network_forward.3} parent=0 // pred_check
    _
  $region15: #{augmentation_network_forward.3} parent=0 // pred_check_branch
    %16 = sbr.rel (0) target = $region17
  $region16: #{augmentation_network_forward.3} parent=0 // pred_region
    _
  $region17: #{augmentation_network_forward.3} parent=0 // pred_fallthru
    _
  %v17 = vld [vmem:[%s1] sm:$0xff]
  %v18 = vld [vmem:[%s0] sm:$0xff]
  %v19 = vld [vmem:[%s0 + $0x8] sm:$0xff]
  %v20 = vld [vmem:[%s0 + $0x10] sm:$0xff]
  %v21 = vld [vmem:[%s0 + $0x18] sm:$0xff]
  %v22 = vld [vmem:[%s0 + $0x20] sm:$0xff]
  %v23 = vld [vmem:[%s0 + $0x28] sm:$0xff]
  %v24 = vld [vmem:[%s0 + $0x30] sm:$0xff]
  %v25 = vld [vmem:[%s0 + $0x38] sm:$0xff]
  %v26 = vld [vmem:[%s0 + $0x40] sm:$0xff]
  %v27 = vld [vmem:[%s0 + $0x48] sm:$0xff]
  %v28 = vld [vmem:[%s0 + $0x50] sm:$0xff]
  %v29 = vld [vmem:[%s0 + $0x58] sm:$0xff]
  %v30 = vld [vmem:[%s0 + $0x60] sm:$0xff]
  %v31 = vld [vmem:[%s0 + $0x68] sm:$0xff]
  %v32 = vld [vmem:[%s0 + $0x70] sm:$0xff]
  %v33 = vld [vmem:[%s0 + $0x78] sm:$0xff]
  %v34 = vld [vmem:[%s0 + $0x80] sm:$0xff]
  %v35 = vld [vmem:[%s0 + $0x88] sm:$0xff]
  %v36 = vld [vmem:[%s0 + $0x90] sm:$0xff]
  %v37 = vld [vmem:[%s0 + $0x98] sm:$0xff]
  %v38 = vld [vmem:[%s0 + $0xa0] sm:$0xff]
  %v39 = vld [vmem:[%s0 + $0xa8] sm:$0xff]
  %v40 = vld [vmem:[%s0 + $0xb0] sm:$0xff]
  %v41 = vld [vmem:[%s0 + $0xb8] sm:$0xff]
  %vm42 = vcmask 261120
  %v44 = vsel %vm42, %v17, 0
  %46 = vmatprep.subr.mxu0 0.0
  %47 = vmatpush1.msra.mxu0 0.0
  %48 = vmatprep.subr.mxu0 0.0
  %49 = vmatpush1.msra.mxu0 0.0
  %50 = vmatprep.subr.mxu0 0.0
  %51 = vmatpush1.msra.mxu0 0.0
  %52 = vmatprep.subr.mxu0 0.0
  %53 = vmatpush1.msra.mxu0 0.0
  %54 = vmatprep.subr.mxu0 0.0
  %55 = vmatpush1.msra.mxu0 0.0
  %56 = vmatprep.subr.mxu0 0.0
  %57 = vmatpush1.msra.mxu0 0.0
  %58 = vmatprep.subr.mxu0 0.0
  %59 = vmatpush1.msra.mxu0 0.0
  %60 = vmatprep.subr.mxu0 0.0
  %61 = vmatpush1.msra.mxu0 0.0
  %62 = vmatprep.subr.mxu0 0.0
  %63 = vmatpush1.msra.mxu0 0.0
  %64 = vmatprep.subr.mxu0 0.0
  %65 = vmatpush1.msra.mxu0 0.0
  %66 = vmatprep.subr.mxu0 0.0
  %67 = vmatpush1.msra.mxu0 0.0
  %68 = vmatprep.subr.mxu0 0.0
  %69 = vmatpush1.msra.mxu0 0.0
  %70 = vmatprep.subr.mxu0 %v37
  %71 = vmatpush1.msra.mxu0 %v36
  %72 = vmatprep.subr.mxu0 %v31
  %73 = vmatpush1.msra.mxu0 %v30
  %74 = vmatprep.subr.mxu0 %v25
  %75 = vmatpush1.msra.mxu0 %v24
  %76 = vmatprep.subr.mxu0 %v19
  %77 = vmatpush1.msra.mxu0 %v18
  %78 = vmatprep.subr.mxu0 0.0
  %79 = vmatpush2.msra.mxu0 0.0
  %80 = vmatprep.subr.mxu0 0.0
  %81 = vmatpush2.msra.mxu0 0.0
  %82 = vmatprep.subr.mxu0 0.0
  %83 = vmatpush2.msra.mxu0 0.0
  %84 = vmatprep.subr.mxu0 0.0
  %85 = vmatpush2.msra.mxu0 0.0
  %86 = vmatprep.subr.mxu0 0.0
  %87 = vmatpush2.msra.mxu0 0.0
  %88 = vmatprep.subr.mxu0 0.0
  %89 = vmatpush2.msra.mxu0 0.0
  %90 = vmatprep.subr.mxu0 0.0
  %91 = vmatpush2.msra.mxu0 0.0
  %92 = vmatprep.subr.mxu0 0.0
  %93 = vmatpush2.msra.mxu0 0.0
  %94 = vmatprep.subr.mxu0 0.0
  %95 = vmatpush2.msra.mxu0 0.0
  %96 = vmatprep.subr.mxu0 0.0
  %97 = vmatpush2.msra.mxu0 0.0
  %98 = vmatprep.subr.mxu0 0.0
  %99 = vmatpush2.msra.mxu0 0.0
  %100 = vmatprep.subr.mxu0 0.0
  %101 = vmatpush2.msra.mxu0 0.0
  %102 = vmatprep.subr.mxu0 0.0
  %103 = vmatpush2.msra.mxu0 0.0
  %104 = vmatprep.subr.mxu0 0.0
  %105 = vmatpush2.msra.mxu0 0.0
  %106 = vmatprep.subr.mxu0 0.0
  %107 = vmatpush2.msra.mxu0 0.0
  %108 = vmatprep.subr.mxu0 0.0
  %109 = vmatpush2.msra.mxu0 0.0
  %110 = vmatprep.mubr.f32.mxu0 0.0
  %111 = vmatmul.mubr.f32.gmra.mxu0 %v44
  %v112 = vpop.f32.mrf.mxu0
  %v113 = vadd.f32 0.0, %v112
  %v114 = vpop.f32.mrf.mxu0
  %v115 = vadd.f32 0.0, %v114
  %116 = vdwg.mxu0
  %117 = vmatprep.subr.mxu0 0.0
  %118 = vmatpush1.msra.mxu0 0.0
  %119 = vmatprep.subr.mxu0 0.0
  %120 = vmatpush1.msra.mxu0 0.0
  %121 = vmatprep.subr.mxu0 0.0
  %122 = vmatpush1.msra.mxu0 0.0
  %123 = vmatprep.subr.mxu0 0.0
  %124 = vmatpush1.msra.mxu0 0.0
  %125 = vmatprep.subr.mxu0 0.0
  %126 = vmatpush1.msra.mxu0 0.0
  %127 = vmatprep.subr.mxu0 0.0
  %128 = vmatpush1.msra.mxu0 0.0
  %129 = vmatprep.subr.mxu0 0.0
  %130 = vmatpush1.msra.mxu0 0.0
  %131 = vmatprep.subr.mxu0 0.0
  %132 = vmatpush1.msra.mxu0 0.0
  %133 = vmatprep.subr.mxu0 0.0
  %134 = vmatpush1.msra.mxu0 0.0
  %135 = vmatprep.subr.mxu0 0.0
  %136 = vmatpush1.msra.mxu0 0.0
  %137 = vmatprep.subr.mxu0 0.0
  %138 = vmatpush1.msra.mxu0 0.0
  %139 = vmatprep.subr.mxu0 0.0
  %140 = vmatpush1.msra.mxu0 0.0
  %141 = vmatprep.subr.mxu0 %v39
  %142 = vmatpush1.msra.mxu0 %v38
  %143 = vmatprep.subr.mxu0 %v33
  %144 = vmatpush1.msra.mxu0 %v32
  %145 = vmatprep.subr.mxu0 %v27
  %146 = vmatpush1.msra.mxu0 %v26
  %147 = vmatprep.subr.mxu0 %v21
  %148 = vmatpush1.msra.mxu0 %v20
  %149 = vmatprep.subr.mxu0 0.0
  %150 = vmatpush2.msra.mxu0 0.0
  %151 = vmatprep.subr.mxu0 0.0
  %152 = vmatpush2.msra.mxu0 0.0
  %153 = vmatprep.subr.mxu0 0.0
  %154 = vmatpush2.msra.mxu0 0.0
  %155 = vmatprep.subr.mxu0 0.0
  %156 = vmatpush2.msra.mxu0 0.0
  %157 = vmatprep.subr.mxu0 0.0
  %158 = vmatpush2.msra.mxu0 0.0
  %159 = vmatprep.subr.mxu0 0.0
  %160 = vmatpush2.msra.mxu0 0.0
  %161 = vmatprep.subr.mxu0 0.0
  %162 = vmatpush2.msra.mxu0 0.0
  %163 = vmatprep.subr.mxu0 0.0
  %164 = vmatpush2.msra.mxu0 0.0
  %165 = vmatprep.subr.mxu0 0.0
  %166 = vmatpush2.msra.mxu0 0.0
  %167 = vmatprep.subr.mxu0 0.0
  %168 = vmatpush2.msra.mxu0 0.0
  %169 = vmatprep.subr.mxu0 0.0
  %170 = vmatpush2.msra.mxu0 0.0
  %171 = vmatprep.subr.mxu0 0.0
  %172 = vmatpush2.msra.mxu0 0.0
  %173 = vmatprep.subr.mxu0 0.0
  %174 = vmatpush2.msra.mxu0 0.0
  %175 = vmatprep.subr.mxu0 0.0
  %176 = vmatpush2.msra.mxu0 0.0
  %177 = vmatprep.subr.mxu0 0.0
  %178 = vmatpush2.msra.mxu0 0.0
  %179 = vmatprep.subr.mxu0 0.0
  %180 = vmatpush2.msra.mxu0 0.0
  %181 = vmatprep.mubr.f32.mxu0 0.0
  %182 = vmatmul.mubr.f32.gmra.mxu0 %v44
  %v183 = vpop.f32.mrf.mxu0
  %v184 = vadd.f32 0.0, %v183
  %v185 = vpop.f32.mrf.mxu0
  %v186 = vadd.f32 0.0, %v185
  %187 = vdwg.mxu0
  %188 = vmatprep.subr.mxu0 0.0
  %189 = vmatpush1.msra.mxu0 0.0
  %190 = vmatprep.subr.mxu0 0.0
  %191 = vmatpush1.msra.mxu0 0.0
  %192 = vmatprep.subr.mxu0 0.0
  %193 = vmatpush1.msra.mxu0 0.0
  %194 = vmatprep.subr.mxu0 0.0
  %195 = vmatpush1.msra.mxu0 0.0
  %196 = vmatprep.subr.mxu0 0.0
  %197 = vmatpush1.msra.mxu0 0.0
  %198 = vmatprep.subr.mxu0 0.0
  %199 = vmatpush1.msra.mxu0 0.0
  %200 = vmatprep.subr.mxu0 0.0
  %201 = vmatpush1.msra.mxu0 0.0
  %202 = vmatprep.subr.mxu0 0.0
  %203 = vmatpush1.msra.mxu0 0.0
  %204 = vmatprep.subr.mxu0 0.0
  %205 = vmatpush1.msra.mxu0 0.0
  %206 = vmatprep.subr.mxu0 0.0
  %207 = vmatpush1.msra.mxu0 0.0
  %208 = vmatprep.subr.mxu0 0.0
  %209 = vmatpush1.msra.mxu0 0.0
  %210 = vmatprep.subr.mxu0 0.0
  %211 = vmatpush1.msra.mxu0 0.0
  %212 = vmatprep.subr.mxu0 %v41
  %213 = vmatpush1.msra.mxu0 %v40
  %214 = vmatprep.subr.mxu0 %v35
  %215 = vmatpush1.msra.mxu0 %v34
  %216 = vmatprep.subr.mxu0 %v29
  %217 = vmatpush1.msra.mxu0 %v28
  %218 = vmatprep.subr.mxu0 %v23
  %219 = vmatpush1.msra.mxu0 %v22
  %220 = vmatprep.subr.mxu0 0.0
  %221 = vmatpush2.msra.mxu0 0.0
  %222 = vmatprep.subr.mxu0 0.0
  %223 = vmatpush2.msra.mxu0 0.0
  %224 = vmatprep.subr.mxu0 0.0
  %225 = vmatpush2.msra.mxu0 0.0
  %226 = vmatprep.subr.mxu0 0.0
  %227 = vmatpush2.msra.mxu0 0.0
  %228 = vmatprep.subr.mxu0 0.0
  %229 = vmatpush2.msra.mxu0 0.0
  %230 = vmatprep.subr.mxu0 0.0
  %231 = vmatpush2.msra.mxu0 0.0
  %232 = vmatprep.subr.mxu0 0.0
  %233 = vmatpush2.msra.mxu0 0.0
  %234 = vmatprep.subr.mxu0 0.0
  %235 = vmatpush2.msra.mxu0 0.0
  %236 = vmatprep.subr.mxu0 0.0
  %237 = vmatpush2.msra.mxu0 0.0
  %238 = vmatprep.subr.mxu0 0.0
  %239 = vmatpush2.msra.mxu0 0.0
  %240 = vmatprep.subr.mxu0 0.0
  %241 = vmatpush2.msra.mxu0 0.0
  %242 = vmatprep.subr.mxu0 0.0
  %243 = vmatpush2.msra.mxu0 0.0
  %244 = vmatprep.subr.mxu0 0.0
  %245 = vmatpush2.msra.mxu0 0.0
  %246 = vmatprep.subr.mxu0 0.0
  %247 = vmatpush2.msra.mxu0 0.0
  %248 = vmatprep.subr.mxu0 0.0
  %249 = vmatpush2.msra.mxu0 0.0
  %250 = vmatprep.subr.mxu0 0.0
  %251 = vmatpush2.msra.mxu0 0.0
  %252 = vmatprep.mubr.f32.mxu0 0.0
  %253 = vmatmul.mubr.f32.gmra.mxu0 %v44
  %v254 = vpop.f32.mrf.mxu0
  %v255 = vadd.f32 0.0, %v254
  %v256 = vpop.f32.mrf.mxu0
  %v257 = vadd.f32 0.0, %v256
  %258 = vdwg.mxu0
  %v259 = vlaneseq
  %v260 = vand.u32 %v259, 127
  %v261 = vadd.s32 %v260, 128
  %v262 = vadd.s32 %v260, 256
  %v263 = vadd.s32 %v260, 384
  %v264 = vadd.s32 %v260, 512
  %v265 = vadd.s32 %v260, 640
  %vm266 = vcmp.lt.s32.totalorder %v260, 648
  %vm267 = vcmp.lt.s32.totalorder %v261, 648
  %vm268 = vcmp.lt.s32.totalorder %v262, 648
  %vm269 = vcmp.lt.s32.totalorder %v263, 648
  %vm270 = vcmp.lt.s32.totalorder %v264, 648
  %vm271 = vcmp.lt.s32.totalorder %v265, 648
  %v272 = vsel %vm266, 1, 0
  %v273 = vsel %vm267, 1, 0
  %v274 = vsel %vm268, 1, 0
  %v275 = vsel %vm269, 1, 0
  %v276 = vsel %vm270, 1, 0
  %v277 = vsel %vm271, 1, 0
  %v278 = vcvt.s32.f32 %v272
  %v279 = vcvt.s32.f32 %v273
  %v280 = vcvt.s32.f32 %v274
  %v281 = vcvt.s32.f32 %v275
  %v282 = vcvt.s32.f32 %v276
  %v283 = vcvt.s32.f32 %v277
  %v284 = vmul.f32 %v113, %v278
  %v285 = vmul.f32 %v115, %v279
  %v286 = vmul.f32 %v184, %v280
  %v287 = vmul.f32 %v186, %v281
  %v288 = vmul.f32 %v255, %v282
  %v289 = vmul.f32 %v257, %v283
  %v290 = vadd.f32 %v284, %v285
  %v291 = vadd.f32 %v290, %v286
  %v292 = vadd.f32 %v291, %v287
  %v293 = vadd.f32 %v292, %v288
  %v294 = vadd.f32 %v293, %v289
  %295 = vadd.xlane.f32.xlu0 %v294
  %v296 = vpop.xlane.xlu0 %295
  %v297 = vmul.f32 %v296, 0.0015432099
  %v298 = vsub.f32 %v113, %v297
  %v299 = vsub.f32 %v115, %v297
  %v300 = vsub.f32 %v184, %v297
  %v301 = vsub.f32 %v186, %v297
  %v302 = vsub.f32 %v255, %v297
  %v303 = vsub.f32 %v257, %v297
  %v304 = vmul.f32 %v298, %v278
  %v305 = vmul.f32 %v299, %v279
  %v306 = vmul.f32 %v300, %v280
  %v307 = vmul.f32 %v301, %v281
  %v308 = vmul.f32 %v302, %v282
  %v309 = vmul.f32 %v303, %v283
  %v310 = vmul.f32 %v304, %v304
  %v311 = vmul.f32 %v305, %v305
  %v312 = vmul.f32 %v306, %v306
  %v313 = vmul.f32 %v307, %v307
  %v314 = vmul.f32 %v308, %v308
  %v315 = vmul.f32 %v309, %v309
  %v316 = vadd.f32 %v310, %v311
  %v317 = vadd.f32 %v316, %v312
  %v318 = vadd.f32 %v317, %v313
  %v319 = vadd.f32 %v318, %v314
  %v320 = vadd.f32 %v319, %v315
  %321 = vadd.xlane.f32.xlu0 %v320
  %v322 = vpop.xlane.xlu0 %321
  %v323 = vmul.f32 %v322, 0.0015432099
  %v324 = vld [vmem:[%s2] sm:$0xff]
  %v325 = vadd.f32 %v323, 1e-05
  %v326 = vrsqrt.pop %v325
  %v327 = vmul.f32 %v324, %v326
  %v328 = vld [vmem:[%s3] sm:$0xff]
  %v329 = vmul.f32 %v297, %v327
  %v330 = vsub.f32 %v328, %v329
  %332 = vset.pattern.permute.xlu0 0
  %333 = vperm.xlu0 %332, %v327
  %v334 = vpop.permute.xlu0 %333
  %v336 = vmul.f32 %v113, %v334
  %v337 = vmul.f32 %v115, %v334
  %v338 = vmul.f32 %v184, %v334
  %v339 = vmul.f32 %v186, %v334
  %v340 = vmul.f32 %v255, %v334
  %v341 = vmul.f32 %v257, %v334
  %343 = vset.pattern.permute.xlu0 0
  %344 = vperm.xlu0 %343, %v330
  %v345 = vpop.permute.xlu0 %344
  %v347 = vadd.f32 %v336, %v345
  %v348 = vadd.f32 %v337, %v345
  %v349 = vadd.f32 %v338, %v345
  %v350 = vadd.f32 %v339, %v345
  %v351 = vadd.f32 %v340, %v345
  %v352 = vadd.f32 %v341, %v345
  %vm353 = vcmp.ge.f32.partialorder %v347, 0.0
  %vm354 = vcmp.ge.f32.partialorder %v348, 0.0
  %vm355 = vcmp.ge.f32.partialorder %v349, 0.0
  %vm356 = vcmp.ge.f32.partialorder %v350, 0.0
  %vm357 = vcmp.ge.f32.partialorder %v351, 0.0
  %vm358 = vcmp.ge.f32.partialorder %v352, 0.0
  %v359 = vmul.f32 %v347, 0.01
  %v360 = vmul.f32 %v348, 0.01
  %v361 = vmul.f32 %v349, 0.01
  %v362 = vmul.f32 %v350, 0.01
  %v363 = vmul.f32 %v351, 0.01
  %v364 = vmul.f32 %v352, 0.01
  %v365 = vsel %vm353, %v347, %v359
  %v366 = vsel %vm354, %v348, %v360
  %v367 = vsel %vm355, %v349, %v361
  %v368 = vsel %vm356, %v350, %v362
  %v369 = vsel %vm357, %v351, %v363
  %v370 = vsel %vm358, %v352, %v364
  %371 = vst [vmem:[%s4] sm:$0xff] %v365
  %372 = vst [vmem:[%s4 + $0x8] sm:$0xff] %v366
  %373 = vst [vmem:[%s4 + $0x10] sm:$0xff] %v367
  %374 = vst [vmem:[%s4 + $0x18] sm:$0xff] %v368
  %375 = vst [vmem:[%s4 + $0x20] sm:$0xff] %v369
  %376 = vst [vmem:[%s4 + $0x28] sm:$0xff] %v370
  // Predicated region
  $region18: #{augmentation_network_forward.3} parent=0 // pred_check
    _
  $region19: #{augmentation_network_forward.3} parent=0 // pred_check_branch
    %378 = sbr.rel (0) target = $region21
  $region20: #{augmentation_network_forward.3} parent=0 // pred_region
    _
  $region21: #{augmentation_network_forward.3} parent=0 // pred_fallthru
    _
  // Predicated region
  $region22: #{augmentation_network_forward.3} parent=0 // pred_check
    _
  $region23: #{augmentation_network_forward.3} parent=0 // pred_check_branch
    %380 = sbr.rel (0) target = $region25
  $region24: #{augmentation_network_forward.3} parent=0 // pred_region
    _
  $region25: #{augmentation_network_forward.3} parent=0 // pred_fallthru
    _

// kernel: augmentation_network_forward.4
$region0: #{augmentation_network_forward.4}
  #allocation0 [shape = 'u32[]', space=smem, size = 0x4, offset = 0x4, fixed_abs, tag = 'smem constant byte address 0x4 - core index']
  #allocation1 [shape = 'u32[144,128]{1,0:T(1,128)}', space=vmem, size = 0x12000, scoped, tag = 'internal scratch']
  %s0 = inlined_call_operand.vmem [shape: f32[72,256], index: 0, kind: input, shape index: {}]
  %s1 = inlined_call_operand.vmem [shape: f32[8,72], index: 1, kind: input, shape index: {}]
  %s2 = inlined_call_operand.vmem [shape: f32[8,1], index: 2, kind: input, shape index: {}]
  %s3 = inlined_call_operand.vmem [shape: f32[8,1], index: 3, kind: input, shape index: {}]
  %s4 = inlined_call_operand.vmem [shape: f32[8,256], index: 4, kind: output, shape index: {}]
  %s5 = sld [smem:[#allocation0]]
  $region26: #{augmentation_network_forward.4} parent=0
    _
  %s7 = ssub.s32 1, %s5
  %s8 = scalar_select 0, %s7, %s5
  // Predicated region
  $region2: #{augmentation_network_forward.4} parent=0 // pred_check
    _
  $region3: #{augmentation_network_forward.4} parent=0 // pred_check_branch
    %10 = sbr.rel (0) target = $region5
  $region4: #{augmentation_network_forward.4} parent=0 // pred_region
    _
  $region5: #{augmentation_network_forward.4} parent=0 // pred_fallthru
    _
  // Predicated region
  $region6: #{augmentation_network_forward.4} parent=0 // pred_check
    _
  $region7: #{augmentation_network_forward.4} parent=0 // pred_check_branch
    %12 = sbr.rel (0) target = $region9
  $region8: #{augmentation_network_forward.4} parent=0 // pred_region
    _
  $region9: #{augmentation_network_forward.4} parent=0 // pred_fallthru
    _
  // Predicated region
  $region10: #{augmentation_network_forward.4} parent=0 // pred_check
    _
  $region11: #{augmentation_network_forward.4} parent=0 // pred_check_branch
    %14 = sbr.rel (0) target = $region13
  $region12: #{augmentation_network_forward.4} parent=0 // pred_region
    _
  $region13: #{augmentation_network_forward.4} parent=0 // pred_fallthru
    _
  // Predicated region
  $region14: #{augmentation_network_forward.4} parent=0 // pred_check
    _
  $region15: #{augmentation_network_forward.4} parent=0 // pred_check_branch
    %16 = sbr.rel (0) target = $region17
  $region16: #{augmentation_network_forward.4} parent=0 // pred_region
    _
  $region17: #{augmentation_network_forward.4} parent=0 // pred_fallthru
    _
  %v17 = vld [vmem:[%s1] sm:$0xff]
  %v18 = vld [vmem:[%s0] sm:$0xff]
  %v19 = vld [vmem:[%s0 + $0x8] sm:$0xff]
  %v20 = vld [vmem:[%s0 + $0x10] sm:$0xff]
  %v21 = vld [vmem:[%s0 + $0x18] sm:$0xff]
  %v22 = vld [vmem:[%s0 + $0x20] sm:$0xff]
  %v23 = vld [vmem:[%s0 + $0x28] sm:$0xff]
  %v24 = vld [vmem:[%s0 + $0x30] sm:$0xff]
  %v25 = vld [vmem:[%s0 + $0x38] sm:$0xff]
  %v26 = vld [vmem:[%s0 + $0x40] sm:$0xff]
  %v27 = vld [vmem:[%s0 + $0x48] sm:$0xff]
  %v28 = vld [vmem:[%s0 + $0x50] sm:$0xff]
  %v29 = vld [vmem:[%s0 + $0x58] sm:$0xff]
  %v30 = vld [vmem:[%s0 + $0x60] sm:$0xff]
  %v31 = vld [vmem:[%s0 + $0x68] sm:$0xff]
  %v32 = vld [vmem:[%s0 + $0x70] sm:$0xff]
  %v33 = vld [vmem:[%s0 + $0x78] sm:$0xff]
  %v34 = vld [vmem:[%s0 + $0x80] sm:$0xff]
  %v35 = vld [vmem:[%s0 + $0x88] sm:$0xff]
  %vm36 = vcmask 588800
  %v38 = vsel %vm36, %v17, 0
  %40 = vmatprep.subr.mxu0 0.0
  %41 = vmatpush1.msra.mxu0 0.0
  %42 = vmatprep.subr.mxu0 0.0
  %43 = vmatpush1.msra.mxu0 0.0
  %44 = vmatprep.subr.mxu0 0.0
  %45 = vmatpush1.msra.mxu0 0.0
  %46 = vmatprep.subr.mxu0 0.0
  %47 = vmatpush1.msra.mxu0 0.0
  %48 = vmatprep.subr.mxu0 0.0
  %49 = vmatpush1.msra.mxu0 0.0
  %50 = vmatprep.subr.mxu0 0.0
  %51 = vmatpush1.msra.mxu0 0.0
  %52 = vmatprep.subr.mxu0 0.0
  %53 = vmatpush1.msra.mxu0 0.0
  %54 = vmatprep.subr.mxu0 %v35
  %55 = vmatpush1.msra.mxu0 %v34
  %56 = vmatprep.subr.mxu0 %v33
  %57 = vmatpush1.msra.mxu0 %v32
  %58 = vmatprep.subr.mxu0 %v31
  %59 = vmatpush1.msra.mxu0 %v30
  %60 = vmatprep.subr.mxu0 %v29
  %61 = vmatpush1.msra.mxu0 %v28
  %62 = vmatprep.subr.mxu0 %v27
  %63 = vmatpush1.msra.mxu0 %v26
  %64 = vmatprep.subr.mxu0 %v25
  %65 = vmatpush1.msra.mxu0 %v24
  %66 = vmatprep.subr.mxu0 %v23
  %67 = vmatpush1.msra.mxu0 %v22
  %68 = vmatprep.subr.mxu0 %v21
  %69 = vmatpush1.msra.mxu0 %v20
  %70 = vmatprep.subr.mxu0 %v19
  %71 = vmatpush1.msra.mxu0 %v18
  %72 = vmatprep.subr.mxu0 0.0
  %73 = vmatpush2.msra.mxu0 0.0
  %74 = vmatprep.subr.mxu0 0.0
  %75 = vmatpush2.msra.mxu0 0.0
  %76 = vmatprep.subr.mxu0 0.0
  %77 = vmatpush2.msra.mxu0 0.0
  %78 = vmatprep.subr.mxu0 0.0
  %79 = vmatpush2.msra.mxu0 0.0
  %80 = vmatprep.subr.mxu0 0.0
  %81 = vmatpush2.msra.mxu0 0.0
  %82 = vmatprep.subr.mxu0 0.0
  %83 = vmatpush2.msra.mxu0 0.0
  %84 = vmatprep.subr.mxu0 0.0
  %85 = vmatpush2.msra.mxu0 0.0
  %86 = vmatprep.subr.mxu0 0.0
  %87 = vmatpush2.msra.mxu0 0.0
  %88 = vmatprep.subr.mxu0 0.0
  %89 = vmatpush2.msra.mxu0 0.0
  %90 = vmatprep.subr.mxu0 0.0
  %91 = vmatpush2.msra.mxu0 0.0
  %92 = vmatprep.subr.mxu0 0.0
  %93 = vmatpush2.msra.mxu0 0.0
  %94 = vmatprep.subr.mxu0 0.0
  %95 = vmatpush2.msra.mxu0 0.0
  %96 = vmatprep.subr.mxu0 0.0
  %97 = vmatpush2.msra.mxu0 0.0
  %98 = vmatprep.subr.mxu0 0.0
  %99 = vmatpush2.msra.mxu0 0.0
  %100 = vmatprep.subr.mxu0 0.0
  %101 = vmatpush2.msra.mxu0 0.0
  %102 = vmatprep.subr.mxu0 0.0
  %103 = vmatpush2.msra.mxu0 0.0
  %104 = vmatprep.mubr.f32.mxu0 0.0
  %105 = vmatmul.mubr.f32.gmra.mxu0 %v38
  %v106 = vpop.f32.mrf.mxu0
  %v107 = vadd.f32 0.0, %v106
  %v108 = vpop.f32.mrf.mxu0
  %v109 = vadd.f32 0.0, %v108
  %110 = vdwg.mxu0
  %v111 = vlaneseq
  %v112 = vand.u32 %v111, 127
  %v113 = vadd.s32 %v112, 128
  %vm114 = vcmp.lt.s32.totalorder %v112, 242
  %vm115 = vcmp.lt.s32.totalorder %v113, 242
  %v116 = vsel %vm114, 1, 0
  %v117 = vsel %vm115, 1, 0
  %v118 = vcvt.s32.f32 %v116
  %v119 = vcvt.s32.f32 %v117
  %v120 = vmul.f32 %v107, %v118
  %v121 = vmul.f32 %v109, %v119
  %v122 = vadd.f32 %v120, %v121
  %123 = vadd.xlane.f32.xlu0 %v122
  %v124 = vpop.xlane.xlu0 %123
  %v125 = vmul.f32 %v124, 0.004132231
  %v126 = vsub.f32 %v107, %v125
  %v127 = vsub.f32 %v109, %v125
  %v128 = vmul.f32 %v126, %v118
  %v129 = vmul.f32 %v127, %v119
  %v130 = vmul.f32 %v128, %v128
  %v131 = vmul.f32 %v129, %v129
  %v132 = vadd.f32 %v130, %v131
  %133 = vadd.xlane.f32.xlu0 %v132
  %v134 = vpop.xlane.xlu0 %133
  %v135 = vmul.f32 %v134, 0.004132231
  %v136 = vld [vmem:[%s2] sm:$0xff]
  %v137 = vadd.f32 %v135, 1e-05
  %v138 = vrsqrt.pop %v137
  %v139 = vmul.f32 %v136, %v138
  %v140 = vld [vmem:[%s3] sm:$0xff]
  %v141 = vmul.f32 %v125, %v139
  %v142 = vsub.f32 %v140, %v141
  %144 = vset.pattern.permute.xlu0 0
  %145 = vperm.xlu0 %144, %v139
  %v146 = vpop.permute.xlu0 %145
  %v148 = vmul.f32 %v107, %v146
  %v149 = vmul.f32 %v109, %v146
  %151 = vset.pattern.permute.xlu0 0
  %152 = vperm.xlu0 %151, %v142
  %v153 = vpop.permute.xlu0 %152
  %v155 = vadd.f32 %v148, %v153
  %v156 = vadd.f32 %v149, %v153
  %vm157 = vcmp.ge.f32.partialorder %v155, 0.0
  %vm158 = vcmp.ge.f32.partialorder %v156, 0.0
  %v159 = vmul.f32 %v155, 0.01
  %v160 = vmul.f32 %v156, 0.01
  %v161 = vsel %vm157, %v155, %v159
  %v162 = vsel %vm158, %v156, %v160
  %163 = vst [vmem:[%s4] sm:$0xff] %v161
  %164 = vst [vmem:[%s4 + $0x8] sm:$0xff] %v162
  // Predicated region
  $region18: #{augmentation_network_forward.4} parent=0 // pred_check
    _
  $region19: #{augmentation_network_forward.4} parent=0 // pred_check_branch
    %166 = sbr.rel (0) target = $region21
  $region20: #{augmentation_network_forward.4} parent=0 // pred_region
    _
  $region21: #{augmentation_network_forward.4} parent=0 // pred_fallthru
    _
  // Predicated region
  $region22: #{augmentation_network_forward.4} parent=0 // pred_check
    _
  $region23: #{augmentation_network_forward.4} parent=0 // pred_check_branch
    %168 = sbr.rel (0) target = $region25
  $region24: #{augmentation_network_forward.4} parent=0 // pred_region
    _
  $region25: #{augmentation_network_forward.4} parent=0 // pred_fallthru
    _

// kernel: augmentation_network_forward.5
$region0: #{augmentation_network_forward.5}
  #allocation0 [shape = 'u32[]', space=smem, size = 0x4, offset = 0x4, fixed_abs, tag = 'smem constant byte address 0x4 - core index']
  #allocation1 [shape = 'u32[144,128]{1,0:T(1,128)}', space=vmem, size = 0x12000, scoped, tag = 'internal scratch']
  %s0 = inlined_call_operand.vmem [shape: f32[1,2,512], index: 0, kind: input, shape index: {}]
  %s1 = inlined_call_operand.vmem [shape: f32[4,512,128], index: 1, kind: input, shape index: {}]
  %s2 = inlined_call_operand.vmem [shape: f32[4,1,128], index: 2, kind: input, shape index: {}]
  %s3 = inlined_call_operand.vmem [shape: f32[4,128,64], index: 3, kind: input, shape index: {}]
  %s4 = inlined_call_operand.vmem [shape: f32[4,1,64], index: 4, kind: input, shape index: {}]
  %s5 = inlined_call_operand.vmem [shape: f32[4,64,6], index: 5, kind: input, shape index: {}]
  %s6 = inlined_call_operand.vmem [shape: f32[4,1,6], index: 6, kind: input, shape index: {}]
  %s7 = inlined_call_operand.vmem [shape: f32[4,2,6], index: 7, kind: output, shape index: {}]
  %s8 = sld [smem:[#allocation0]]
  $region61: #{augmentation_network_forward.5} parent=0
    _
  %s10 = ssub.s32 1, %s8
  %s11 = scalar_select 0, %s10, %s8
  loop: start=0, step=1, limit=6
  $region2: #{augmentation_network_forward.5} parent=0 // loop_pre_header
    _
  $region3: #{augmentation_network_forward.5} parent=0 // loop_header
    %s13 = sphi 0, %s17
    %p14 = scmp.ge.s32.totalorder %s13, 6
    %s21 = sphi 0, %s21
    %s23 = sphi 0, %s21
    %s24 = sphi 0, %s23
    %s38 = sphi 0, %s24
    %s44 = sphi 0, %s46
    %s47 = sphi 0, %s44
    %s48 = sphi 0, %s47
    %s64 = sphi 0, %s48
    %s70 = sphi 0, %s72
    %s73 = sphi 0, %s70
    %s74 = sphi 0, %s73
    %s90 = sphi 0, %s74
    %s96 = sphi 0, %s98
    %s99 = sphi 0, %s96
    %s100 = sphi 0, %s99
    %s116 = sphi 0, %s100
    %s122 = sphi 0, %s124
    %s125 = sphi 0, %s122
    %s126 = sphi 0, %s125
    %s142 = sphi 0, %s126
    %s148 = sphi 0, %s150
    %s151 = sphi 0, %s148
    %s152 = sphi 0, %s151
    %s168 = sphi 0, %s152
    %s174 = sphi 0, %s176
    %s177 = sphi 0, %s174
    %s178 = sphi 0, %s177
    %s194 = sphi 0, %s178
    %s200 = sphi 0, %s202
    %s203 = sphi 0, %s200
    %s204 = sphi 0, %s203
    %s220 = sphi 0, %s204
  $region4: #{augmentation_network_forward.5} parent=0 // loop_header_branch
    %16 = sbr.rel (%p14) target = $region8
  $region5: #{augmentation_network_forward.5} parent=0 // loop_body
    %s18 = ssub.s32 %s13, 1
    %s19 = ssub.s32 %s13, 2
    %s20 = sadd.s32 %s13, 1
    %s22 = sadd.s32 %s21, 1
    %p25 = scmp.eq.s32.totalorder %s13, 3
    %p26 = scmp.ne.s32.totalorder %s21, %s23
    %p27 = scmp.eq.s32.totalorder %s13, 0
    %p28 = por %p26, %p27
    %p29 = scmp.ne.s32.totalorder %s21, %s23
    %p30 = scmp.eq.s32.totalorder %s18, 3
    %p31 = por %p29, %p30
    %p32 = scmp.ne.s32.totalorder %s23, %s24
    %p33 = scmp.eq.s32.totalorder %s18, 0
    %p34 = por %p32, %p33
    %p35 = scmp.ne.s32.totalorder %s23, %s24
    %p36 = scmp.eq.s32.totalorder %s19, 3
    %p37 = por %p35, %p36
    %p39 = scmp.ne.s32.totalorder %s24, %s38
    %p40 = scmp.eq.s32.totalorder %s19, 0
    %p41 = por %p39, %p40
    %s42 = ssub.s32 %s13, %s20
    %p43 = scmp.eq.s32.totalorder %s42, 0
    %s45 = sadd.s32 %s44, 1
    %s46 = scalar_select %p43, %s44, %s45
    %p49 = pneg %p43
    %p50 = scmp.eq.s32.totalorder %s13, 3
    %p51 = por %p49, %p50
    %p52 = scmp.ne.s32.totalorder %s44, %s47
    %p53 = scmp.eq.s32.totalorder %s13, 0
    %p54 = por %p52, %p53
    %p55 = scmp.ne.s32.totalorder %s44, %s47
    %p56 = scmp.eq.s32.totalorder %s18, 3
    %p57 = por %p55, %p56
    %p58 = scmp.ne.s32.totalorder %s47, %s48
    %p59 = scmp.eq.s32.totalorder %s18, 0
    %p60 = por %p58, %p59
    %p61 = scmp.ne.s32.totalorder %s47, %s48
    %p62 = scmp.eq.s32.totalorder %s19, 3
    %p63 = por %p61, %p62
    %p65 = scmp.ne.s32.totalorder %s48, %s64
    %p66 = scmp.eq.s32.totalorder %s19, 0
    %p67 = por %p65, %p66
    %s68 = ssub.s32 %s13, %s20
    %p69 = scmp.eq.s32.totalorder %s68, 0
    %s71 = sadd.s32 %s70, 1
    %s72 = scalar_select %p69, %s70, %s71
    %p75 = pneg %p69
    %p76 = scmp.eq.s32.totalorder %s13, 3
    %p77 = por %p75, %p76
    %p78 = scmp.ne.s32.totalorder %s70, %s73
    %p79 = scmp.eq.s32.totalorder %s13, 0
    %p80 = por %p78, %p79
    %p81 = scmp.ne.s32.totalorder %s70, %s73
    %p82 = scmp.eq.s32.totalorder %s18, 3
    %p83 = por %p81, %p82
    %p84 = scmp.ne.s32.totalorder %s73, %s74
    %p85 = scmp.eq.s32.totalorder %s18, 0
    %p86 = por %p84, %p85
    %p87 = scmp.ne.s32.totalorder %s73, %s74
    %p88 = scmp.eq.s32.totalorder %s19, 3
    %p89 = por %p87, %p88
    %p91 = scmp.ne.s32.totalorder %s74, %s90
    %p92 = scmp.eq.s32.totalorder %s19, 0
    %p93 = por %p91, %p92
    %s94 = ssub.s32 %s13, %s20
    %p95 = scmp.eq.s32.totalorder %s94, 0
    %s97 = sadd.s32 %s96, 1
    %s98 = scalar_select %p95, %s96, %s97
    %p101 = pneg %p95
    %p102 = scmp.eq.s32.totalorder %s13, 3
    %p103 = por %p101, %p102
    %p104 = scmp.ne.s32.totalorder %s96, %s99
    %p105 = scmp.eq.s32.totalorder %s13, 0
    %p106 = por %p104, %p105
    %p107 = scmp.ne.s32.totalorder %s96, %s99
    %p108 = scmp.eq.s32.totalorder %s18, 3
    %p109 = por %p107, %p108
    %p110 = scmp.ne.s32.totalorder %s99, %s100
    %p111 = scmp.eq.s32.totalorder %s18, 0
    %p112 = por %p110, %p111
    %p113 = scmp.ne.s32.totalorder %s99, %s100
    %p114 = scmp.eq.s32.totalorder %s19, 3
    %p115 = por %p113, %p114
    %p117 = scmp.ne.s32.totalorder %s100, %s116
    %p118 = scmp.eq.s32.totalorder %s19, 0
    %p119 = por %p117, %p118
    %s120 = ssub.s32 %s13, %s20
    %p121 = scmp.eq.s32.totalorder %s120, 0
    %s123 = sadd.s32 %s122, 1
    %s124 = scalar_select %p121, %s122, %s123
    %p127 = pneg %p121
    %p128 = scmp.eq.s32.totalorder %s13, 3
    %p129 = por %p127, %p128
    %p130 = scmp.ne.s32.totalorder %s122, %s125
    %p131 = scmp.eq.s32.totalorder %s13, 0
    %p132 = por %p130, %p131
    %p133 = scmp.ne.s32.totalorder %s122, %s125
    %p134 = scmp.eq.s32.totalorder %s18, 3
    %p135 = por %p133, %p134
    %p136 = scmp.ne.s32.totalorder %s125, %s126
    %p137 = scmp.eq.s32.totalorder %s18, 0
    %p138 = por %p136, %p137
    %p139 = scmp.ne.s32.totalorder %s125, %s126
    %p140 = scmp.eq.s32.totalorder %s19, 3
    %p141 = por %p139, %p140
    %p143 = scmp.ne.s32.totalorder %s126, %s142
    %p144 = scmp.eq.s32.totalorder %s19, 0
    %p145 = por %p143, %p144
    %s146 = ssub.s32 %s13, %s20
    %p147 = scmp.eq.s32.totalorder %s146, 0
    %s149 = sadd.s32 %s148, 1
    %s150 = scalar_select %p147, %s148, %s149
    %p153 = pneg %p147
    %p154 = scmp.eq.s32.totalorder %s13, 3
    %p155 = por %p153, %p154
    %p156 = scmp.ne.s32.totalorder %s148, %s151
    %p157 = scmp.eq.s32.totalorder %s13, 0
    %p158 = por %p156, %p157
    %p159 = scmp.ne.s32.totalorder %s148, %s151
    %p160 = scmp.eq.s32.totalorder %s18, 3
    %p161 = por %p159, %p160
    %p162 = scmp.ne.s32.totalorder %s151, %s152
    %p163 = scmp.eq.s32.totalorder %s18, 0
    %p164 = por %p162, %p163
    %p165 = scmp.ne.s32.totalorder %s151, %s152
    %p166 = scmp.eq.s32.totalorder %s19, 3
    %p167 = por %p165, %p166
    %p169 = scmp.ne.s32.totalorder %s152, %s168
    %p170 = scmp.eq.s32.totalorder %s19, 0
    %p171 = por %p169, %p170
    %s172 = ssub.s32 %s13, %s20
    %p173 = scmp.eq.s32.totalorder %s172, 0
    %s175 = sadd.s32 %s174, 1
    %s176 = scalar_select %p173, %s174, %s175
    %p179 = pneg %p173
    %p180 = scmp.eq.s32.totalorder %s13, 3
    %p181 = por %p179, %p180
    %p182 = scmp.ne.s32.totalorder %s174, %s177
    %p183 = scmp.eq.s32.totalorder %s13, 0
    %p184 = por %p182, %p183
    %p185 = scmp.ne.s32.totalorder %s174, %s177
    %p186 = scmp.eq.s32.totalorder %s18, 3
    %p187 = por %p185, %p186
    %p188 = scmp.ne.s32.totalorder %s177, %s178
    %p189 = scmp.eq.s32.totalorder %s18, 0
    %p190 = por %p188, %p189
    %p191 = scmp.ne.s32.totalorder %s177, %s178
    %p192 = scmp.eq.s32.totalorder %s19, 3
    %p193 = por %p191, %p192
    %p195 = scmp.ne.s32.totalorder %s178, %s194
    %p196 = scmp.eq.s32.totalorder %s19, 0
    %p197 = por %p195, %p196
    %s198 = ssub.s32 %s13, %s20
    %p199 = scmp.eq.s32.totalorder %s198, 0
    %s201 = sadd.s32 %s200, 1
    %s202 = scalar_select %p199, %s200, %s201
    %p205 = pneg %p199
    %p206 = scmp.eq.s32.totalorder %s13, 3
    %p207 = por %p205, %p206
    %p208 = scmp.ne.s32.totalorder %s200, %s203
    %p209 = scmp.eq.s32.totalorder %s13, 0
    %p210 = por %p208, %p209
    %p211 = scmp.ne.s32.totalorder %s200, %s203
    %p212 = scmp.eq.s32.totalorder %s18, 3
    %p213 = por %p211, %p212
    %p214 = scmp.ne.s32.totalorder %s203, %s204
    %p215 = scmp.eq.s32.totalorder %s18, 0
    %p216 = por %p214, %p215
    %p217 = scmp.ne.s32.totalorder %s203, %s204
    %p218 = scmp.eq.s32.totalorder %s19, 3
    %p219 = por %p217, %p218
    %p221 = scmp.ne.s32.totalorder %s204, %s220
    %p222 = scmp.eq.s32.totalorder %s19, 0
    %p223 = por %p221, %p222
    %p224 = scmp.le.s32.totalorder 1, %s13
    %p225 = scmp.lt.s32.totalorder %s13, 5
    %p226 = pnand %p224, %p225
    %p227 = pneg %p226
    // Predicated region
    $region9: #{augmentation_network_forward.5} parent=5 // pred_check
      _
    $region10: #{augmentation_network_forward.5} parent=5 // pred_check_branch
      %229 = sbr.rel (%p226) target = $region12
    $region11: #{augmentation_network_forward.5} parent=5 // pred_region
      %s230 = ssub.s32 %s13, 1
      // Predicated region
      $region13: #{augmentation_network_forward.5} parent=11 // pred_check
        %p231 = pneg %p34
      $region14: #{augmentation_network_forward.5} parent=11 // pred_check_branch
        %233 = sbr.rel (%p231) target = $region16
      $region15: #{augmentation_network_forward.5} parent=11 // pred_region
        _
      $region16: #{augmentation_network_forward.5} parent=11 // pred_fallthru
        _
    $region12: #{augmentation_network_forward.5} parent=5 // pred_fallthru
      _
    %p234 = scmp.lt.s32.totalorder %s13, 4
    // Predicated region
    $region17: #{augmentation_network_forward.5} parent=5 // pred_check
      %p235 = pneg %p234
    $region18: #{augmentation_network_forward.5} parent=5 // pred_check_branch
      %237 = sbr.rel (%p235) target = $region20
    $region19: #{augmentation_network_forward.5} parent=5 // pred_region
      // Predicated region
      $region21: #{augmentation_network_forward.5} parent=19 // pred_check
        %p238 = pneg %p54
      $region22: #{augmentation_network_forward.5} parent=19 // pred_check_branch
        %240 = sbr.rel (%p238) target = $region24
      $region23: #{augmentation_network_forward.5} parent=19 // pred_region
        %p241 = scmp.lt.s32.totalorder %s13, 3
        %s242 = scalar_select %p241, %s13, 3
        %s243 = smul.addr %s242, 64
        %s244 = smul.addr %s243, 8
        %s245 = scalar_lea.vmem %s1, %s244
      $region24: #{augmentation_network_forward.5} parent=19 // pred_fallthru
        _
      // Predicated region
      $region25: #{augmentation_network_forward.5} parent=19 // pred_check
        %p246 = pneg %p80
      $region26: #{augmentation_network_forward.5} parent=19 // pred_check_branch
        %248 = sbr.rel (%p246) target = $region28
      $region27: #{augmentation_network_forward.5} parent=19 // pred_region
        %p249 = scmp.lt.s32.totalorder %s13, 3
        %s250 = scalar_select %p249, %s13, 3
        %s251 = scalar_lea.vmem %s2, %s250
      $region28: #{augmentation_network_forward.5} parent=19 // pred_fallthru
        _
      // Predicated region
      $region29: #{augmentation_network_forward.5} parent=19 // pred_check
        %p252 = pneg %p106
      $region30: #{augmentation_network_forward.5} parent=19 // pred_check_branch
        %254 = sbr.rel (%p252) target = $region32
      $region31: #{augmentation_network_forward.5} parent=19 // pred_region
        %p255 = scmp.lt.s32.totalorder %s13, 3
        %s256 = scalar_select %p255, %s13, 3
        %s257 = smul.addr %s256, 16
        %s258 = smul.addr %s257, 8
        %s259 = scalar_lea.vmem %s3, %s258
      $region32: #{augmentation_network_forward.5} parent=19 // pred_fallthru
        _
      // Predicated region
      $region33: #{augmentation_network_forward.5} parent=19 // pred_check
        %p260 = pneg %p132
      $region34: #{augmentation_network_forward.5} parent=19 // pred_check_branch
        %262 = sbr.rel (%p260) target = $region36
      $region35: #{augmentation_network_forward.5} parent=19 // pred_region
        %p263 = scmp.lt.s32.totalorder %s13, 3
        %s264 = scalar_select %p263, %s13, 3
        %s265 = scalar_lea.vmem %s4, %s264
      $region36: #{augmentation_network_forward.5} parent=19 // pred_fallthru
        _
      // Predicated region
      $region37: #{augmentation_network_forward.5} parent=19 // pred_check
        %p266 = pneg %p158
      $region38: #{augmentation_network_forward.5} parent=19 // pred_check_branch
        %268 = sbr.rel (%p266) target = $region40
      $region39: #{augmentation_network_forward.5} parent=19 // pred_region
        %p269 = scmp.lt.s32.totalorder %s13, 3
        %s270 = scalar_select %p269, %s13, 3
        %s271 = smul.addr %s270, 8
        %s272 = smul.addr %s271, 8
        %s273 = scalar_lea.vmem %s5, %s272
      $region40: #{augmentation_network_forward.5} parent=19 // pred_fallthru
        _
      // Predicated region
      $region41: #{augmentation_network_forward.5} parent=19 // pred_check
        %p274 = pneg %p184
      $region42: #{augmentation_network_forward.5} parent=19 // pred_check_branch
        %276 = sbr.rel (%p274) target = $region44
      $region43: #{augmentation_network_forward.5} parent=19 // pred_region
        %p277 = scmp.lt.s32.totalorder %s13, 3
        %s278 = scalar_select %p277, %s13, 3
        %s279 = scalar_lea.vmem %s6, %s278
      $region44: #{augmentation_network_forward.5} parent=19 // pred_fallthru
        _
    $region20: #{augmentation_network_forward.5} parent=5 // pred_fallthru
      _
    %p280 = scmp.le.s32.totalorder 1, %s13
    %p281 = scmp.lt.s32.totalorder %s13, 5
    %p282 = pnand %p280, %p281
    %p283 = pneg %p282
    // Predicated region
    $region45: #{augmentation_network_forward.5} parent=5 // pred_check
      _
    $region46: #{augmentation_network_forward.5} parent=5 // pred_check_branch
      %285 = sbr.rel (%p282) target = $region48
    $region47: #{augmentation_network_forward.5} parent=5 // pred_region
      %s286 = ssub.s32 %s13, 1
      %p287 = pneg %p34
      %p288 = pneg %p31
      %p289 = scmp.lt.s32.totalorder %s18, 3
      %s290 = scalar_select %p289, %s18, 3
      %s291 = smul.addr %s290, 64
      %s292 = smul.addr %s291, 8
      %s293 = scalar_lea.vmem %s1, %s292
      %p294 = pneg %p60
      %p295 = pneg %p57
      %p296 = scmp.lt.s32.totalorder %s18, 3
      %s297 = scalar_select %p296, %s18, 3
      %s298 = scalar_lea.vmem %s2, %s297
      %p299 = pneg %p86
      %p300 = pneg %p83
      %p301 = scmp.lt.s32.totalorder %s18, 3
      %s302 = scalar_select %p301, %s18, 3
      %s303 = smul.addr %s302, 16
      %s304 = smul.addr %s303, 8
      %s305 = scalar_lea.vmem %s3, %s304
      %p306 = pneg %p112
      %p307 = pneg %p109
      %p308 = scmp.lt.s32.totalorder %s18, 3
      %s309 = scalar_select %p308, %s18, 3
      %s310 = scalar_lea.vmem %s4, %s309
      %p311 = pneg %p138
      %p312 = pneg %p135
      %p313 = scmp.lt.s32.totalorder %s18, 3
      %s314 = scalar_select %p313, %s18, 3
      %s315 = smul.addr %s314, 8
      %s316 = smul.addr %s315, 8
      %s317 = scalar_lea.vmem %s5, %s316
      %p318 = pneg %p164
      %p319 = pneg %p161
      %p320 = scmp.lt.s32.totalorder %s18, 3
      %s321 = scalar_select %p320, %s18, 3
      %s322 = scalar_lea.vmem %s6, %s321
      %p323 = pneg %p190
      %p324 = pneg %p187
      %p325 = pneg %p216
      %p326 = pneg %p213
      %p327 = scmp.lt.s32.totalorder %s18, 3
      %s328 = scalar_select %p327, %s18, 3
      %s329 = smul.addr %s328, 2
      %s330 = scalar_lea.vmem %s7, %s329
      %p331 = scmp.lt.s32.totalorder %s18, 3
      %s332 = scalar_select %p331, %s18, 3
      %s333 = smul.addr %s332, 64
      %s334 = smul.addr %s333, 8
      %s335 = scalar_lea.vmem %s1, %s334
      %p336 = scmp.lt.s32.totalorder %s18, 3
      %s337 = scalar_select %p336, %s18, 3
      %s338 = scalar_lea.vmem %s2, %s337
      %p339 = scmp.lt.s32.totalorder %s18, 3
      %s340 = scalar_select %p339, %s18, 3
      %s341 = smul.addr %s340, 16
      %s342 = smul.addr %s341, 8
      %s343 = scalar_lea.vmem %s3, %s342
      %p344 = scmp.lt.s32.totalorder %s18, 3
      %s345 = scalar_select %p344, %s18, 3
      %s346 = scalar_lea.vmem %s4, %s345
      %p347 = scmp.lt.s32.totalorder %s18, 3
      %s348 = scalar_select %p347, %s18, 3
      %s349 = smul.addr %s348, 8
      %s350 = smul.addr %s349, 8
      %s351 = scalar_lea.vmem %s5, %s350
      %p352 = scmp.lt.s32.totalorder %s18, 3
      %s353 = scalar_select %p352, %s18, 3
      %s354 = scalar_lea.vmem %s6, %s353
      %p355 = scmp.lt.s32.totalorder %s18, 3
      %s356 = scalar_select %p355, %s18, 3
      %s357 = smul.addr %s356, 2
      %s358 = scalar_lea.vmem %s7, %s357
      %v359 = vld [vmem:[%s0] sm:$0xff]
      %v360 = vld [vmem:[%s335] sm:$0xff]
      %v361 = vld [vmem:[%s335 + $0x8] sm:$0xff]
      %v362 = vld [vmem:[%s335 + $0x10] sm:$0xff]
      %v363 = vld [vmem:[%s335 + $0x18] sm:$0xff]
      %v364 = vld [vmem:[%s335 + $0x20] sm:$0xff]
      %v365 = vld [vmem:[%s335 + $0x28] sm:$0xff]
      %v366 = vld [vmem:[%s335 + $0x30] sm:$0xff]
      %v367 = vld [vmem:[%s335 + $0x38] sm:$0xff]
      %v368 = vld [vmem:[%s335 + $0x40] sm:$0xff]
      %v369 = vld [vmem:[%s335 + $0x48] sm:$0xff]
      %v370 = vld [vmem:[%s335 + $0x50] sm:$0xff]
      %v371 = vld [vmem:[%s335 + $0x58] sm:$0xff]
      %v372 = vld [vmem:[%s335 + $0x60] sm:$0xff]
      %v373 = vld [vmem:[%s335 + $0x68] sm:$0xff]
      %v374 = vld [vmem:[%s335 + $0x70] sm:$0xff]
      %v375 = vld [vmem:[%s335 + $0x78] sm:$0xff]
      %v376 = vld [vmem:[%s335 + $0x80] sm:$0xff]
      %v377 = vld [vmem:[%s335 + $0x88] sm:$0xff]
      %v378 = vld [vmem:[%s335 + $0x90] sm:$0xff]
      %v379 = vld [vmem:[%s335 + $0x98] sm:$0xff]
      %v380 = vld [vmem:[%s335 + $0xa0] sm:$0xff]
      %v381 = vld [vmem:[%s335 + $0xa8] sm:$0xff]
      %v382 = vld [vmem:[%s335 + $0xb0] sm:$0xff]
      %v383 = vld [vmem:[%s335 + $0xb8] sm:$0xff]
      %v384 = vld [vmem:[%s335 + $0xc0] sm:$0xff]
      %v385 = vld [vmem:[%s335 + $0xc8] sm:$0xff]
      %v386 = vld [vmem:[%s335 + $0xd0] sm:$0xff]
      %v387 = vld [vmem:[%s335 + $0xd8] sm:$0xff]
      %v388 = vld [vmem:[%s335 + $0xe0] sm:$0xff]
      %v389 = vld [vmem:[%s335 + $0xe8] sm:$0xff]
      %v390 = vld [vmem:[%s335 + $0xf0] sm:$0xff]
      %v391 = vld [vmem:[%s335 + $0xf8] sm:$0xff]
      %v392 = vld [vmem:[%s335 + $0x100] sm:$0xff]
      %v393 = vld [vmem:[%s335 + $0x108] sm:$0xff]
      %v394 = vld [vmem:[%s335 + $0x110] sm:$0xff]
      %v395 = vld [vmem:[%s335 + $0x118] sm:$0xff]
      %v396 = vld [vmem:[%s335 + $0x120] sm:$0xff]
      %v397 = vld [vmem:[%s335 + $0x128] sm:$0xff]
      %v398 = vld [vmem:[%s335 + $0x130] sm:$0xff]
      %v399 = vld [vmem:[%s335 + $0x138] sm:$0xff]
      %v400 = vld [vmem:[%s335 + $0x140] sm:$0xff]
      %v401 = vld [vmem:[%s335 + $0x148] sm:$0xff]
      %v402 = vld [vmem:[%s335 + $0x150] sm:$0xff]
      %v403 = vld [vmem:[%s335 + $0x158] sm:$0xff]
      %v404 = vld [vmem:[%s335 + $0x160] sm:$0xff]
      %v405 = vld [vmem:[%s335 + $0x168] sm:$0xff]
      %v406 = vld [vmem:[%s335 + $0x170] sm:$0xff]
      %v407 = vld [vmem:[%s335 + $0x178] sm:$0xff]
      %v408 = vld [vmem:[%s335 + $0x180] sm:$0xff]
      %v409 = vld [vmem:[%s335 + $0x188] sm:$0xff]
      %v410 = vld [vmem:[%s335 + $0x190] sm:$0xff]
      %v411 = vld [vmem:[%s335 + $0x198] sm:$0xff]
      %v412 = vld [vmem:[%s335 + $0x1a0] sm:$0xff]
      %v413 = vld [vmem:[%s335 + $0x1a8] sm:$0xff]
      %v414 = vld [vmem:[%s335 + $0x1b0] sm:$0xff]
      %v415 = vld [vmem:[%s335 + $0x1b8] sm:$0xff]
      %v416 = vld [vmem:[%s335 + $0x1c0] sm:$0xff]
      %v417 = vld [vmem:[%s335 + $0x1c8] sm:$0xff]
      %v418 = vld [vmem:[%s335 + $0x1d0] sm:$0xff]
      %v419 = vld [vmem:[%s335 + $0x1d8] sm:$0xff]
      %v420 = vld [vmem:[%s335 + $0x1e0] sm:$0xff]
      %v421 = vld [vmem:[%s335 + $0x1e8] sm:$0xff]
      %v422 = vld [vmem:[%s335 + $0x1f0] sm:$0xff]
      %v423 = vld [vmem:[%s335 + $0x1f8] sm:$0xff]
      %v424 = vld [vmem:[%s338] sm:$0x1]
      %v426 = vlaneseq
      %v427 = vshrl.u32 %v426, 7
      %v428 = vsub.s32 0, %v427
      %v429 = vrot.slane %v424, %v428
      %v432 = vcombine.high %v359, %v359
      %v434 = vunpack.c.l.s4 1983009808
      %v435 = vunpack.c.0.s8 %v434
      %v436 = vlaneseq
      %v437 = vshrl.u32 %v436, 7
      %v438 = vsub.s32 %v435, %v437
      %v439 = vrot.slane %v359, %v438
      %v441 = vunpack.c.l.s4 1983009808
      %v442 = vunpack.c.0.s8 %v441
      %v443 = vlaneseq
      %v444 = vshrl.u32 %v443, 7
      %v445 = vsub.s32 %v442, %v444
      %v446 = vrot.slane %v432, %v445
      %v447 = vcombine.high %v439, %v439
      %v448 = vcombine.high %v446, %v446
      %453 = vmatprep.subr.mxu0 0.0
      %454 = vmatpush1.msra.mxu0 %v375
      %455 = vmatprep.subr.mxu0 0.0
      %456 = vmatpush1.msra.mxu0 %v374
      %457 = vmatprep.subr.mxu0 0.0
      %458 = vmatpush1.msra.mxu0 %v373
      %459 = vmatprep.subr.mxu0 0.0
      %460 = vmatpush1.msra.mxu0 %v372
      %461 = vmatprep.subr.mxu0 0.0
      %462 = vmatpush1.msra.mxu0 %v371
      %463 = vmatprep.subr.mxu0 0.0
      %464 = vmatpush1.msra.mxu0 %v370
      %465 = vmatprep.subr.mxu0 0.0
      %466 = vmatpush1.msra.mxu0 %v369
      %467 = vmatprep.subr.mxu0 0.0
      %468 = vmatpush1.msra.mxu0 %v368
      %469 = vmatprep.subr.mxu0 0.0
      %470 = vmatpush1.msra.mxu0 %v367
      %471 = vmatprep.subr.mxu0 0.0
      %472 = vmatpush1.msra.mxu0 %v366
      %473 = vmatprep.subr.mxu0 0.0
      %474 = vmatpush1.msra.mxu0 %v365
      %475 = vmatprep.subr.mxu0 0.0
      %476 = vmatpush1.msra.mxu0 %v364
      %477 = vmatprep.subr.mxu0 0.0
      %478 = vmatpush1.msra.mxu0 %v363
      %479 = vmatprep.subr.mxu0 0.0
      %480 = vmatpush1.msra.mxu0 %v362
      %481 = vmatprep.subr.mxu0 0.0
      %482 = vmatpush1.msra.mxu0 %v361
      %483 = vmatprep.subr.mxu0 0.0
      %484 = vmatpush1.msra.mxu0 %v360
      %485 = vmatprep.subr.mxu0 0.0
      %486 = vmatpush2.msra.mxu0 %v391
      %487 = vmatprep.subr.mxu0 0.0
      %488 = vmatpush2.msra.mxu0 %v390
      %489 = vmatprep.subr.mxu0 0.0
      %490 = vmatpush2.msra.mxu0 %v389
      %491 = vmatprep.subr.mxu0 0.0
      %492 = vmatpush2.msra.mxu0 %v388
      %493 = vmatprep.subr.mxu0 0.0
      %494 = vmatpush2.msra.mxu0 %v387
      %495 = vmatprep.subr.mxu0 0.0
      %496 = vmatpush2.msra.mxu0 %v386
      %497 = vmatprep.subr.mxu0 0.0
      %498 = vmatpush2.msra.mxu0 %v385
      %499 = vmatprep.subr.mxu0 0.0
      %500 = vmatpush2.msra.mxu0 %v384
      %501 = vmatprep.subr.mxu0 0.0
      %502 = vmatpush2.msra.mxu0 %v383
      %503 = vmatprep.subr.mxu0 0.0
      %504 = vmatpush2.msra.mxu0 %v382
      %505 = vmatprep.subr.mxu0 0.0
      %506 = vmatpush2.msra.mxu0 %v381
      %507 = vmatprep.subr.mxu0 0.0
      %508 = vmatpush2.msra.mxu0 %v380
      %509 = vmatprep.subr.mxu0 0.0
      %510 = vmatpush2.msra.mxu0 %v379
      %511 = vmatprep.subr.mxu0 0.0
      %512 = vmatpush2.msra.mxu0 %v378
      %513 = vmatprep.subr.mxu0 0.0
      %514 = vmatpush2.msra.mxu0 %v377
      %515 = vmatprep.subr.mxu0 0.0
      %516 = vmatpush2.msra.mxu0 %v376
      %517 = vmatprep.mubr.f32.mxu0 %v447
      %518 = vmatmul.mubr.f32.gmra.mxu0 %v439
      %v519 = vpop.f32.mrf.mxu0
      %v520 = vadd.f32 %v429, %v519
      %v521 = vpop.f32.mrf.mxu0
      %522 = vdwg.mxu0
      %523 = vmatprep.subr.mxu0 0.0
      %524 = vmatpush1.msra.mxu0 %v407
      %525 = vmatprep.subr.mxu0 0.0
      %526 = vmatpush1.msra.mxu0 %v406
      %527 = vmatprep.subr.mxu0 0.0
      %528 = vmatpush1.msra.mxu0 %v405
      %529 = vmatprep.subr.mxu0 0.0
      %530 = vmatpush1.msra.mxu0 %v404
      %531 = vmatprep.subr.mxu0 0.0
      %532 = vmatpush1.msra.mxu0 %v403
      %533 = vmatprep.subr.mxu0 0.0
      %534 = vmatpush1.msra.mxu0 %v402
      %535 = vmatprep.subr.mxu0 0.0
      %536 = vmatpush1.msra.mxu0 %v401
      %537 = vmatprep.subr.mxu0 0.0
      %538 = vmatpush1.msra.mxu0 %v400
      %539 = vmatprep.subr.mxu0 0.0
      %540 = vmatpush1.msra.mxu0 %v399
      %541 = vmatprep.subr.mxu0 0.0
      %542 = vmatpush1.msra.mxu0 %v398
      %543 = vmatprep.subr.mxu0 0.0
      %544 = vmatpush1.msra.mxu0 %v397
      %545 = vmatprep.subr.mxu0 0.0
      %546 = vmatpush1.msra.mxu0 %v396
      %547 = vmatprep.subr.mxu0 0.0
      %548 = vmatpush1.msra.mxu0 %v395
      %549 = vmatprep.subr.mxu0 0.0
      %550 = vmatpush1.msra.mxu0 %v394
      %551 = vmatprep.subr.mxu0 0.0
      %552 = vmatpush1.msra.mxu0 %v393
      %553 = vmatprep.subr.mxu0 0.0
      %554 = vmatpush1.msra.mxu0 %v392
      %555 = vmatprep.subr.mxu0 0.0
      %556 = vmatpush2.msra.mxu0 %v423
      %557 = vmatprep.subr.mxu0 0.0
      %558 = vmatpush2.msra.mxu0 %v422
      %559 = vmatprep.subr.mxu0 0.0
      %560 = vmatpush2.msra.mxu0 %v421
      %561 = vmatprep.subr.mxu0 0.0
      %562 = vmatpush2.msra.mxu0 %v420
      %563 = vmatprep.subr.mxu0 0.0
      %564 = vmatpush2.msra.mxu0 %v419
      %565 = vmatprep.subr.mxu0 0.0
      %566 = vmatpush2.msra.mxu0 %v418
      %567 = vmatprep.subr.mxu0 0.0
      %568 = vmatpush2.msra.mxu0 %v417
      %569 = vmatprep.subr.mxu0 0.0
      %570 = vmatpush2.msra.mxu0 %v416
      %571 = vmatprep.subr.mxu0 0.0
      %572 = vmatpush2.msra.mxu0 %v415
      %573 = vmatprep.subr.mxu0 0.0
      %574 = vmatpush2.msra.mxu0 %v414
      %575 = vmatprep.subr.mxu0 0.0
      %576 = vmatpush2.msra.mxu0 %v413
      %577 = vmatprep.subr.mxu0 0.0
      %578 = vmatpush2.msra.mxu0 %v412
      %579 = vmatprep.subr.mxu0 0.0
      %580 = vmatpush2.msra.mxu0 %v411
      %581 = vmatprep.subr.mxu0 0.0
      %582 = vmatpush2.msra.mxu0 %v410
      %583 = vmatprep.subr.mxu0 0.0
      %584 = vmatpush2.msra.mxu0 %v409
      %585 = vmatprep.subr.mxu0 0.0
      %586 = vmatpush2.msra.mxu0 %v408
      %587 = vmatprep.mubr.f32.mxu0 %v448
      %588 = vmatmul.mubr.f32.gmra.mxu0 %v446
      %v589 = vpop.f32.mrf.mxu0
      %v590 = vadd.f32 %v520, %v589
      %v591 = vpop.f32.mrf.mxu0
      %592 = vdwg.mxu0
      %vm593 = vcmp.ge.f32.partialorder %v590, 0.0
      %v594 = vmul.f32 %v590, 0.01
      %v595 = vsel %vm593, %v590, %v594
      %v596 = vld [vmem:[%s343] sm:$0xff]
      %v597 = vld [vmem:[%s343 + $0x8] sm:$0xff]
      %v598 = vld [vmem:[%s343 + $0x10] sm:$0xff]
      %v599 = vld [vmem:[%s343 + $0x18] sm:$0xff]
      %v600 = vld [vmem:[%s343 + $0x20] sm:$0xff]
      %v601 = vld [vmem:[%s343 + $0x28] sm:$0xff]
      %v602 = vld [vmem:[%s343 + $0x30] sm:$0xff]
      %v603 = vld [vmem:[%s343 + $0x38] sm:$0xff]
      %v604 = vld [vmem:[%s343 + $0x40] sm:$0xff]
      %v605 = vld [vmem:[%s343 + $0x48] sm:$0xff]
      %v606 = vld [vmem:[%s343 + $0x50] sm:$0xff]
      %v607 = vld [vmem:[%s343 + $0x58] sm:$0xff]
      %v608 = vld [vmem:[%s343 + $0x60] sm:$0xff]
      %v609 = vld [vmem:[%s343 + $0x68] sm:$0xff]
      %v610 = vld [vmem:[%s343 + $0x70] sm:$0xff]
      %v611 = vld [vmem:[%s343 + $0x78] sm:$0xff]
      %v612 = vld [vmem:[%s346] sm:$0x1]
      %v614 = vlaneseq
      %v615 = vshrl.u32 %v614, 7
      %v616 = vsub.s32 0, %v615
      %v617 = vrot.slane %v612, %v616
      %619 = vmatprep.subr.mxu0 0.0
      %620 = vmatpush1.msra.mxu0 %v611
      %621 = vmatprep.subr.mxu0 0.0
      %622 = vmatpush1.msra.mxu0 %v610
      %623 = vmatprep.subr.mxu0 0.0
      %624 = vmatpush1.msra.mxu0 %v609
      %625 = vmatprep.subr.mxu0 0.0
      %626 = vmatpush1.msra.mxu0 %v608
      %627 = vmatprep.subr.mxu0 0.0
      %628 = vmatpush1.msra.mxu0 %v607
      %629 = vmatprep.subr.mxu0 0.0
      %630 = vmatpush1.msra.mxu0 %v606
      %631 = vmatprep.subr.mxu0 0.0
      %632 = vmatpush1.msra.mxu0 %v605
      %633 = vmatprep.subr.mxu0 0.0
      %634 = vmatpush1.msra.mxu0 %v604
      %635 = vmatprep.subr.mxu0 0.0
      %636 = vmatpush1.msra.mxu0 %v603
      %637 = vmatprep.subr.mxu0 0.0
      %638 = vmatpush1.msra.mxu0 %v602
      %639 = vmatprep.subr.mxu0 0.0
      %640 = vmatpush1.msra.mxu0 %v601
      %641 = vmatprep.subr.mxu0 0.0
      %642 = vmatpush1.msra.mxu0 %v600
      %643 = vmatprep.subr.mxu0 0.0
      %644 = vmatpush1.msra.mxu0 %v599
      %645 = vmatprep.subr.mxu0 0.0
      %646 = vmatpush1.msra.mxu0 %v598
      %647 = vmatprep.subr.mxu0 0.0
      %648 = vmatpush1.msra.mxu0 %v597
      %649 = vmatprep.subr.mxu0 0.0
      %650 = vmatpush1.msra.mxu0 %v596
      %651 = vmatprep.subr.mxu0 0.0
      %652 = vmatpush2.msra.mxu0 0.0
      %653 = vmatprep.subr.mxu0 0.0
      %654 = vmatpush2.msra.mxu0 0.0
      %655 = vmatprep.subr.mxu0 0.0
      %656 = vmatpush2.msra.mxu0 0.0
      %657 = vmatprep.subr.mxu0 0.0
      %658 = vmatpush2.msra.mxu0 0.0
      %659 = vmatprep.subr.mxu0 0.0
      %660 = vmatpush2.msra.mxu0 0.0
      %661 = vmatprep.subr.mxu0 0.0
      %662 = vmatpush2.msra.mxu0 0.0
      %663 = vmatprep.subr.mxu0 0.0
      %664 = vmatpush2.msra.mxu0 0.0
      %665 = vmatprep.subr.mxu0 0.0
      %666 = vmatpush2.msra.mxu0 0.0
      %667 = vmatprep.subr.mxu0 0.0
      %668 = vmatpush2.msra.mxu0 0.0
      %669 = vmatprep.subr.mxu0 0.0
      %670 = vmatpush2.msra.mxu0 0.0
      %671 = vmatprep.subr.mxu0 0.0
      %672 = vmatpush2.msra.mxu0 0.0
      %673 = vmatprep.subr.mxu0 0.0
      %674 = vmatpush2.msra.mxu0 0.0
      %675 = vmatprep.subr.mxu0 0.0
      %676 = vmatpush2.msra.mxu0 0.0
      %677 = vmatprep.subr.mxu0 0.0
      %678 = vmatpush2.msra.mxu0 0.0
      %679 = vmatprep.subr.mxu0 0.0
      %680 = vmatpush2.msra.mxu0 0.0
      %681 = vmatprep.subr.mxu0 0.0
      %682 = vmatpush2.msra.mxu0 0.0
      %683 = vmatprep.mubr.f32.mxu0 0.0
      %684 = vmatmul.mubr.f32.gmra.mxu0 %v595
      %v685 = vpop.f32.mrf.mxu0
      %v686 = vadd.f32 %v617, %v685
      %v687 = vpop.f32.mrf.mxu0
      %688 = vdwg.mxu0
      %vm689 = vcmp.ge.f32.partialorder %v686, 0.0
      %v690 = vmul.f32 %v686, 0.01
      %v691 = vsel %vm689, %v686, %v690
      %v692 = vld [vmem:[%s351] sm:$0xff]
      %v693 = vld [vmem:[%s351 + $0x8] sm:$0xff]
      %v694 = vld [vmem:[%s351 + $0x10] sm:$0xff]
      %v695 = vld [vmem:[%s351 + $0x18] sm:$0xff]
      %v696 = vld [vmem:[%s351 + $0x20] sm:$0xff]
      %v697 = vld [vmem:[%s351 + $0x28] sm:$0xff]
      %v698 = vld [vmem:[%s351 + $0x30] sm:$0xff]
      %v699 = vld [vmem:[%s351 + $0x38] sm:$0xff]
      %v700 = vld [vmem:[%s354] sm:$0x1]
      %v702 = vlaneseq
      %v703 = vshrl.u32 %v702, 7
      %v704 = vsub.s32 0, %v703
      %v705 = vrot.slane %v700, %v704
      %vm707 = vcmask 523264
      %v709 = vsel %vm707, %v691, 0
      %711 = vmatprep.subr.mxu0 0.0
      %712 = vmatpush1.msra.mxu0 0.0
      %713 = vmatprep.subr.mxu0 0.0
      %714 = vmatpush1.msra.mxu0 0.0
      %715 = vmatprep.subr.mxu0 0.0
      %716 = vmatpush1.msra.mxu0 0.0
      %717 = vmatprep.subr.mxu0 0.0
      %718 = vmatpush1.msra.mxu0 0.0
      %719 = vmatprep.subr.mxu0 0.0
      %720 = vmatpush1.msra.mxu0 0.0
      %721 = vmatprep.subr.mxu0 0.0
      %722 = vmatpush1.msra.mxu0 0.0
      %723 = vmatprep.subr.mxu0 0.0
      %724 = vmatpush1.msra.mxu0 0.0
      %725 = vmatprep.subr.mxu0 0.0
      %726 = vmatpush1.msra.mxu0 0.0
      %727 = vmatprep.subr.mxu0 0.0
      %728 = vmatpush1.msra.mxu0 %v699
      %729 = vmatprep.subr.mxu0 0.0
      %730 = vmatpush1.msra.mxu0 %v698
      %731 = vmatprep.subr.mxu0 0.0
      %732 = vmatpush1.msra.mxu0 %v697
      %733 = vmatprep.subr.mxu0 0.0
      %734 = vmatpush1.msra.mxu0 %v696
      %735 = vmatprep.subr.mxu0 0.0
      %736 = vmatpush1.msra.mxu0 %v695
      %737 = vmatprep.subr.mxu0 0.0
      %738 = vmatpush1.msra.mxu0 %v694
      %739 = vmatprep.subr.mxu0 0.0
      %740 = vmatpush1.msra.mxu0 %v693
      %741 = vmatprep.subr.mxu0 0.0
      %742 = vmatpush1.msra.mxu0 %v692
      %743 = vmatprep.subr.mxu0 0.0
      %744 = vmatpush2.msra.mxu0 0.0
      %745 = vmatprep.subr.mxu0 0.0
      %746 = vmatpush2.msra.mxu0 0.0
      %747 = vmatprep.subr.mxu0 0.0
      %748 = vmatpush2.msra.mxu0 0.0
      %749 = vmatprep.subr.mxu0 0.0
      %750 = vmatpush2.msra.mxu0 0.0
      %751 = vmatprep.subr.mxu0 0.0
      %752 = vmatpush2.msra.mxu0 0.0
      %753 = vmatprep.subr.mxu0 0.0
      %754 = vmatpush2.msra.mxu0 0.0
      %755 = vmatprep.subr.mxu0 0.0
      %756 = vmatpush2.msra.mxu0 0.0
      %757 = vmatprep.subr.mxu0 0.0
      %758 = vmatpush2.msra.mxu0 0.0
      %759 = vmatprep.subr.mxu0 0.0
      %760 = vmatpush2.msra.mxu0 0.0
      %761 = vmatprep.subr.mxu0 0.0
      %762 = vmatpush2.msra.mxu0 0.0
      %763 = vmatprep.subr.mxu0 0.0
      %764 = vmatpush2.msra.mxu0 0.0
      %765 = vmatprep.subr.mxu0 0.0
      %766 = vmatpush2.msra.mxu0 0.0
      %767 = vmatprep.subr.mxu0 0.0
      %768 = vmatpush2.msra.mxu0 0.0
      %769 = vmatprep.subr.mxu0 0.0
      %770 = vmatpush2.msra.mxu0 0.0
      %771 = vmatprep.subr.mxu0 0.0
      %772 = vmatpush2.msra.mxu0 0.0
      %773 = vmatprep.subr.mxu0 0.0
      %774 = vmatpush2.msra.mxu0 0.0
      %775 = vmatprep.mubr.f32.mxu0 0.0
      %776 = vmatmul.mubr.f32.gmra.mxu0 %v709
      %v777 = vpop.f32.mrf.mxu0
      %v778 = vadd.f32 %v705, %v777
      %v779 = vpop.f32.mrf.mxu0
      %780 = vdwg.mxu0
      %vm781 = vcmask 41984
      %782 = vst.msk [vmem:[%s358] sm:$0x3] %vm781, %v778
      %p783 = scmp.lt.s32.totalorder %s18, 3
      %s784 = scalar_select %p783, %s18, 3
      %s785 = smul.addr %s784, 2
      %s786 = scalar_lea.vmem %s7, %s785
      // Predicated region
      $region49: #{augmentation_network_forward.5} parent=47 // pred_check
        %p787 = pneg %p213
      $region50: #{augmentation_network_forward.5} parent=47 // pred_check_branch
        %789 = sbr.rel (%p787) target = $region52
      $region51: #{augmentation_network_forward.5} parent=47 // pred_region
        _
      $region52: #{augmentation_network_forward.5} parent=47 // pred_fallthru
        _
    $region48: #{augmentation_network_forward.5} parent=5 // pred_fallthru
      _
    %p790 = scmp.le.s32.totalorder 2, %s13
    // Predicated region
    $region53: #{augmentation_network_forward.5} parent=5 // pred_check
      %p791 = pneg %p790
    $region54: #{augmentation_network_forward.5} parent=5 // pred_check_branch
      %793 = sbr.rel (%p791) target = $region56
    $region55: #{augmentation_network_forward.5} parent=5 // pred_region
      %s794 = ssub.s32 %s13, 2
      // Predicated region
      $region57: #{augmentation_network_forward.5} parent=55 // pred_check
        %p795 = pneg %p219
      $region58: #{augmentation_network_forward.5} parent=55 // pred_check_branch
        %797 = sbr.rel (%p795) target = $region60
      $region59: #{augmentation_network_forward.5} parent=55 // pred_region
        %p798 = scmp.lt.s32.totalorder %s19, 3
        %s799 = scalar_select %p798, %s19, 3
        %s800 = smul.addr %s799, 2
        %s801 = scalar_lea.vmem %s7, %s800
      $region60: #{augmentation_network_forward.5} parent=55 // pred_fallthru
        _
    $region56: #{augmentation_network_forward.5} parent=5 // pred_fallthru
      _
  $region6: #{augmentation_network_forward.5} parent=0 // loop_footer
    %s17 = sadd.s32 1, %s13
  $region7: #{augmentation_network_forward.5} parent=0 // loop_footer_branch
    %12 = sbr.rel target = $region3
  $region8: #{augmentation_network_forward.5} parent=0 // loop_exit
    _

</llo_original>
